<compile_context>
chip_gen: v7x
topology: tpu7x:2x2x1
jax: 0.10.0
libtpu: 0.0.40
codegen_flags: <defaults>
</compile_context>

<pallas_src>
import functools

import jax
import jax.numpy as jnp
from jax import lax
from jax.experimental import pallas as pl
from jax.experimental.pallas import tpu as pltpu

_MM_DTYPE = jnp.bfloat16   # operand dtype for the big conv / fc matmuls (f32 accumulation)


# ----------------------------------------------------------------- slab packing helpers

def _slab_layout(shapes):
    """shapes: list of (key, (rows, cols)).  Rows of each entry are padded to a
    multiple of 8 so every in-kernel row slice is sublane-aligned."""
    offsets, total, width = {}, 0, 1
    for key, (h, w) in shapes:
        offsets[key] = (total, h, w)
        total += -(-h // 8) * 8
        width = max(width, w)
    return offsets, total, width


def _pack_slab(entries, offsets, total_rows, width, dtype):
    slab = jnp.zeros((total_rows, width), dtype)
    for key, a in entries:
        r, h, w = offsets[key]
        slab = slab.at[r:r + h, :w].set(a.astype(dtype))
    return slab


# ------------------------------------------------------------------------------ kernel

def _gru_kernel(x_ref, y_ref, w_ref, p_ref, o_ref, *, S, N, w_off, p_off):
    """One grid step == one batch.  x_ref / y_ref / o_ref are (C, L)."""

    def wslab(key):
        r, h, w = w_off[key]
        return w_ref[r:r + h, 0:w]

    def pslab(key):
        r, h, w = p_off[key]
        return p_ref[r:r + h, 0:w]

    x = x_ref[...]                                   # (C, L) f32
    y = y_ref[...]
    xb = x.astype(_MM_DTYPE)
    yb = y.astype(_MM_DTYPE)

    # 1x1 convs (BN folded); conv_state and conv_state2 fused into one MXU pass.
    xs12 = jnp.dot(wslab("w12"), xb, preferred_element_type=jnp.float32) + pslab("b12")
    xs, xs2 = xs12[0:S, :], xs12[S:2 * S, :]                                  # (S, L)
    yp = (jnp.dot(wslab("wp"), yb, preferred_element_type=jnp.float32)
          + pslab("bp"))                                                      # (N, L), 1/L folded

    # z = (xs @ yp^T) / L for this batch (1/L already folded into wp/bp).
    z = lax.dot_general(xs, yp, (((1,), (1,)), ((), ())),
                        preferred_element_type=jnp.float32)                   # (S, N)

    def gcn(v, tag):
        out = None
        for pool in (2, 4, 8):
            sp = S // pool
            wa_t = pslab(f"{tag}_wa{pool}")                                   # (N, N)
            ba = pslab(f"{tag}_ba{pool}")                                     # (1, N)
            wb = pslab(f"{tag}_wb{pool}")                                     # (S, sp)
            bb = pslab(f"{tag}_bb{pool}")                                     # (S, 1)
            # AdaptiveMaxPool2d((None, S/pool)) over the state axis == max over
            # `pool` consecutive rows (reshape+max; the GCN matrices are tiny).
            pooled = jnp.max(v.reshape(sp, pool, N), axis=1)                  # (sp, N)
            g = jnp.dot(pooled, wa_t, preferred_element_type=jnp.float32) + ba + pooled
            g = jnp.where(g >= 0, g, 0.2 * g)                                 # LeakyReLU(0.2)
            t = jnp.dot(wb, g, preferred_element_type=jnp.float32) + bb       # (S, N)
            out = t if out is None else out + t
        return out

    r2 = gcn(gcn(z, "g1"), "g2")                                              # (S, N)

    # state = r2^T @ xs2 ; out = x + blocker(fc_2(state)) + y  (BN folded into wfc/bfc)
    state = lax.dot_general(r2, xs2, (((0,), (0,)), ((), ())),
                            preferred_element_type=jnp.float32)               # (N, L)
    fc = (jnp.dot(wslab("wfc"), state.astype(_MM_DTYPE),
                  preferred_element_type=jnp.float32) + pslab("bfc"))         # (C, L)
    o_ref[...] = x + fc + y


# -------------------------------------------------------------------- parameters / glue

def init_params(key, num_in, num_mid):
    S = 2 * num_mid          # num_s
    N = num_mid              # num_n
    keys = iter(jax.random.split(key, 64))

    def nrm(shape, scale=0.1):
        return scale * jax.random.normal(next(keys), shape, jnp.float32)

    def bn_fold(c):
        gamma = 1.0 + nrm((c,))
        beta = nrm((c,))
        mean = nrm((c,))
        var = 1.0 + 0.1 * jax.random.uniform(next(keys), (c,), jnp.float32)
        scale = gamma / jnp.sqrt(var + 1e-5)
        bias = beta - mean * scale
        return scale, bias

    def conv_bn(cout, cin):
        # Conv2d(cin, cout, 1, bias=False) followed by eval-mode BatchNorm2d, folded.
        w = nrm((cout, cin))
        scale, bias = bn_fold(cout)
        return w * scale[:, None], bias[:, None]

    def gcn_params():
        # mc*: Conv1d(N, N, 1, bias=True); mc*_1: Conv1d(S//pool, S, 1, bias=True).
        p = []
        for pool in (2, 4, 8):
            wa = nrm((N, N))
            ba = nrm((N,))
            wb = nrm((S, S // pool))
            bb = nrm((S,))
            p += [wa.T, ba[None, :], wb, bb[:, None]]   # channel-mix weight pre-transposed
        return tuple(p)

    params = dict(
        conv_state=conv_bn(S, num_in),
        conv_proj=conv_bn(N, num_in),
        conv_state2=conv_bn(S, num_in),
        gcn1=gcn_params(),
        gcn2=gcn_params(),
    )
    wfc = nrm((num_in, num_in))          # fc_2: Conv2d(num_in, num_in, 1, bias=False)
    scale, bias = bn_fold(num_in)        # blocker: BatchNorm2d(num_in), eval mode
    params["fc_blocker"] = (wfc * scale[:, None], bias[:, None])
    return params


def gru_forward(x, y, params):
    B, C, H, W = x.shape
    L = H * W

    ws1, bs1 = params["conv_state"]
    wp, bp = params["conv_proj"]
    ws2, bs2 = params["conv_state2"]
    wfc, bfc = params["fc_blocker"]
    S, N = ws1.shape[0], wp.shape[0]
    assert N == C, "the hard-coded .view in the reference requires num_n == num_in"
    assert S % 8 == 0, "GCN_MS adaptive pools require num_state % 8 == 0 (num_mid % 4 == 0)"

    # Fold the 1/L bmm scale into conv_proj (exact up to rounding order).
    wp = wp * (1.0 / L)
    bp = bp * (1.0 / L)

    # ---- pack all parameters into two slabs (2 resident DMAs instead of ~35). ----
    w_entries = [("w12", jnp.concatenate([ws1, ws2], axis=0)),   # (2S, C)
                 ("wp", wp), ("wfc", wfc)]
    p_entries = [("b12", jnp.concatenate([bs1, bs2], axis=0)),   # (2S, 1)
                 ("bp", bp), ("bfc", bfc)]
    for tag, gp in (("g1", params["gcn1"]), ("g2", params["gcn2"])):
        for idx, pool in enumerate((2, 4, 8)):
            wa_t, ba, wb, bb = gp[4 * idx: 4 * idx + 4]
            p_entries += [(f"{tag}_wa{pool}", wa_t), (f"{tag}_ba{pool}", ba),
                          (f"{tag}_wb{pool}", wb), (f"{tag}_bb{pool}", bb)]

    w_off, w_rows, w_width = _slab_layout([(k, v.shape) for k, v in w_entries])
    p_off, p_rows, p_width = _slab_layout([(k, v.shape) for k, v in p_entries])
    w_slab = _pack_slab(w_entries, w_off, w_rows, w_width, _MM_DTYPE)
    p_slab = _pack_slab(p_entries, p_off, p_rows, p_width, jnp.float32)

    xr = x.reshape(B, C, L).astype(jnp.float32)
    yr = y.reshape(B, C, L).astype(jnp.float32)

    # Advisory cost estimate for the XLA scheduler.
    flops = B * (2 * L * (2 * S * C + N * C + C * C) + 2 * 2 * S * N * L)
    for pool in (2, 4, 8):
        sp = S // pool
        flops += B * 2 * 2 * (sp * N * N + S * sp * N)
    bytes_accessed = 4 * (xr.size + yr.size + B * C * L + p_slab.size) + 2 * w_slab.size

    out = pl.pallas_call(
        functools.partial(_gru_kernel, S=S, N=N, w_off=w_off, p_off=p_off),
        out_shape=jax.ShapeDtypeStruct((B, C, L), jnp.float32),
        grid=(B,),
        in_specs=[
            pl.BlockSpec((None, C, L), lambda b: (b, 0, 0)),      # x   (this batch)
            pl.BlockSpec((None, C, L), lambda b: (b, 0, 0)),      # y   (this batch)
            pl.BlockSpec((w_rows, w_width), lambda b: (0, 0)),    # bf16 weight slab (resident)
            pl.BlockSpec((p_rows, p_width), lambda b: (0, 0)),    # f32 bias/GCN slab (resident)
        ],
        out_specs=pl.BlockSpec((None, C, L), lambda b: (b, 0, 0)),
        compiler_params=pltpu.CompilerParams(
            dimension_semantics=("parallel",),        # v7x: 2 TensorCores split the batches
            vmem_limit_bytes=48 * 1024 * 1024),
        cost_estimate=pl.CostEstimate(flops=int(flops), transcendentals=0,
                                      bytes_accessed=int(bytes_accessed)),
    )(xr, yr, w_slab, p_slab)

    return out.reshape(B, C, H, W)


# -------------------------------------------------------------------- pure-JAX reference

def gru_reference(x, y, params):
    """Pure-JAX reference with the same numeric choices as the kernel (BN / 1/L folded,
    bf16 MXU operands, f32 accumulation) for a correctness check."""
    B, C, H, W = x.shape
    L = H * W
    q = lambda a: a.astype(_MM_DTYPE).astype(jnp.float32)
    ein = functools.partial(jnp.einsum, precision=jax.lax.Precision.HIGHEST)

    ws1, bs1 = params["conv_state"]
    wp, bp = params["conv_proj"]
    ws2, bs2 = params["conv_state2"]
    wfc, bfc = params["fc_blocker"]
    S, N = ws1.shape[0], wp.shape[0]

    xr = x.reshape(B, C, L).astype(jnp.float32)
    yr = y.reshape(B, C, L).astype(jnp.float32)
    xs = ein("sc,bcl->bsl", q(ws1), q(xr)) + bs1
    xs2 = ein("sc,bcl->bsl", q(ws2), q(xr)) + bs2
    yp = ein("nc,bcl->bnl", q(wp / L), q(yr)) + bp / L
    z = ein("bsl,bnl->bsn", xs, yp)

    def gcn(v, gp):
        out = 0.0
        for idx, pool in enumerate((2, 4, 8)):
            wa_t, ba, wb, bb = gp[4 * idx: 4 * idx + 4]
            sp = S // pool
            pooled = jnp.max(v.reshape(B, sp, pool, N), axis=2)
            g = ein("bpn,nm->bpm", pooled, wa_t) + ba + pooled
            g = jnp.where(g >= 0, g, 0.2 * g)
            out = out + ein("sp,bpn->bsn", wb, g) + bb
        return out

    r2 = gcn(gcn(z, params["gcn1"]), params["gcn2"])
    state = ein("bsn,bsl->bnl", r2, xs2)
    fc = ein("cn,bnl->bcl", q(wfc), q(state)) + bfc
    return (xr + fc + yr).reshape(B, C, H, W)


if __name__ == "__main__":
    key = jax.random.PRNGKey(0)
    kx, ky, kp = jax.random.split(key, 3)

    # num_in = num_mid = 8 -> num_s = 16, num_n = 8 (== num_in, required by the view);
    # H = W = 16 -> L = 256 lanes per batch (full 128-lane tiles, unmasked stores).
    B, C, H, W = 2, 8, 16, 16
    x = jax.random.normal(kx, (B, C, H, W), jnp.float32)
    y = jax.random.normal(ky, (B, C, H, W), jnp.float32)
    params = init_params(kp, num_in=C, num_mid=C)

    fwd = jax.jit(gru_forward)
    out = fwd(x, y, params)
    jax.block_until_ready(out)
    assert out.shape == (B, C, H, W) and out.dtype == jnp.float32

    ref = gru_reference(x, y, params)
    max_err = float(jnp.max(jnp.abs(out - ref)))
    assert max_err < 1e-2, f"kernel/reference mismatch: max |err| = {max_err}"
    print("KERNEL_OK")
</pallas_src>

<mosaic_0001>
module attributes {stable_mosaic.version = 11 : i64} {
  func.func @_gru_kernel(%arg0: i32, %arg1: memref<1x8x256xf32, #tpu.memory_space<vmem>>, %arg2: memref<1x8x256xf32, #tpu.memory_space<vmem>>, %arg3: memref<48x8xbf16, #tpu.memory_space<vmem>>, %arg4: memref<336x8xf32, #tpu.memory_space<vmem>>, %arg5: memref<1x8x256xf32, #tpu.memory_space<vmem>>) attributes {dimension_semantics = [#tpu.dimension_semantics<parallel>], iteration_bounds = array<i64: 2>, scalar_prefetch = 0 : i64, scratch_operands = 0 : i64, tpu.core_type = #tpu.core_type<tc>, window_params = [{transform_indices = @transform_0, window_bounds = array<i64: 1, 8, 256>}, {transform_indices = @transform_1, window_bounds = array<i64: 1, 8, 256>}, {pipeline_mode = #tpu.pipeline_mode<synchronous>, transform_indices = @transform_2, window_bounds = array<i64: 48, 8>}, {pipeline_mode = #tpu.pipeline_mode<synchronous>, transform_indices = @transform_3, window_bounds = array<i64: 336, 8>}, {transform_indices = @transform_4, window_bounds = array<i64: 1, 8, 256>}]} {
    %c0 = arith.constant 0 : index
    %c0_0 = arith.constant 0 : index
    %c0_1 = arith.constant 0 : index
    %0 = vector.load %arg1[%c0, %c0_0, %c0_1] : memref<1x8x256xf32, #tpu.memory_space<vmem>>, vector<1x8x256xf32>
    %1 = vector.shape_cast %0 : vector<1x8x256xf32> to vector<8x256xf32>
    %c0_2 = arith.constant 0 : index
    %c0_3 = arith.constant 0 : index
    %c0_4 = arith.constant 0 : index
    %2 = vector.load %arg2[%c0_2, %c0_3, %c0_4] : memref<1x8x256xf32, #tpu.memory_space<vmem>>, vector<1x8x256xf32>
    %3 = vector.shape_cast %2 : vector<1x8x256xf32> to vector<8x256xf32>
    %4 = arith.truncf %1 : vector<8x256xf32> to vector<8x256xbf16>
    %5 = arith.truncf %3 : vector<8x256xf32> to vector<8x256xbf16>
    %c0_5 = arith.constant 0 : index
    %c0_6 = arith.constant 0 : index
    %6 = vector.load %arg3[%c0_5, %c0_6] : memref<48x8xbf16, #tpu.memory_space<vmem>>, vector<32x8xbf16>
    %cst = arith.constant dense<0.000000e+00> : vector<32x256xf32>
    %7 = tpu.matmul %6, %4, %cst {dimension_numbers = #tpu.dot_dimension_numbers<[1], [0], [0], [1], [0, 0, 1, 1], [], []>} : vector<32x8xbf16>, vector<8x256xbf16>, vector<32x256xf32> -> vector<32x256xf32>
    %c0_7 = arith.constant 0 : index
    %c0_8 = arith.constant 0 : index
    %8 = vector.load %arg4[%c0_7, %c0_8] : memref<336x8xf32, #tpu.memory_space<vmem>>, vector<32x1xf32>
    %9 = vector.broadcast %8 : vector<32x1xf32> to vector<32x256xf32>
    %10 = arith.addf %7, %9 : vector<32x256xf32>
    %11 = vector.extract_strided_slice %10 {offsets = [0, 0], sizes = [16, 256], strides = [1, 1]} : vector<32x256xf32> to vector<16x256xf32>
    %12 = vector.extract_strided_slice %10 {offsets = [16, 0], sizes = [16, 256], strides = [1, 1]} : vector<32x256xf32> to vector<16x256xf32>
    %c32 = arith.constant 32 : index
    %c0_9 = arith.constant 0 : index
    %13 = vector.load %arg3[%c32, %c0_9] : memref<48x8xbf16, #tpu.memory_space<vmem>>, vector<8x8xbf16>
    %cst_10 = arith.constant dense<0.000000e+00> : vector<8x256xf32>
    %14 = tpu.matmul %13, %5, %cst_10 {dimension_numbers = #tpu.dot_dimension_numbers<[1], [0], [0], [1], [0, 0, 1, 1], [], []>} : vector<8x8xbf16>, vector<8x256xbf16>, vector<8x256xf32> -> vector<8x256xf32>
    %c32_11 = arith.constant 32 : index
    %c0_12 = arith.constant 0 : index
    %15 = vector.load %arg4[%c32_11, %c0_12] : memref<336x8xf32, #tpu.memory_space<vmem>>, vector<8x1xf32>
    %16 = vector.broadcast %15 : vector<8x1xf32> to vector<8x256xf32>
    %17 = arith.addf %14, %16 : vector<8x256xf32>
    %cst_13 = arith.constant dense<0.000000e+00> : vector<16x8xf32>
    %18 = tpu.matmul %11, %17, %cst_13 {dimension_numbers = #tpu.dot_dimension_numbers<[1], [1], [0], [0], [0, 0, 1, 0], [], []>} : vector<16x256xf32>, vector<8x256xf32>, vector<16x8xf32> -> vector<16x8xf32>
    %c48 = arith.constant 48 : index
    %c0_14 = arith.constant 0 : index
    %19 = vector.load %arg4[%c48, %c0_14] : memref<336x8xf32, #tpu.memory_space<vmem>>, vector<8x8xf32>
    %c56 = arith.constant 56 : index
    %c0_15 = arith.constant 0 : index
    %20 = vector.load %arg4[%c56, %c0_15] : memref<336x8xf32, #tpu.memory_space<vmem>>, vector<1x8xf32>
    %c64 = arith.constant 64 : index
    %c0_16 = arith.constant 0 : index
    %21 = vector.load %arg4[%c64, %c0_16] : memref<336x8xf32, #tpu.memory_space<vmem>>, vector<16x8xf32>
    %c80 = arith.constant 80 : index
    %c0_17 = arith.constant 0 : index
    %22 = vector.load %arg4[%c80, %c0_17] : memref<336x8xf32, #tpu.memory_space<vmem>>, vector<16x1xf32>
    %23 = vector.shape_cast %18 : vector<16x8xf32> to vector<8x2x8xf32>
    %cst_18 = arith.constant dense<0xFF800000> : vector<8x8xf32>
    %24 = vector.multi_reduction <maximumf>, %23, %cst_18 [1] : vector<8x2x8xf32> to vector<8x8xf32>
    %cst_19 = arith.constant dense<0.000000e+00> : vector<8x8xf32>
    %25 = tpu.matmul %24, %19, %cst_19 {dimension_numbers = #tpu.dot_dimension_numbers<[1], [0], [0], [1], [0, 0, 1, 1], [], []>} : vector<8x8xf32>, vector<8x8xf32>, vector<8x8xf32> -> vector<8x8xf32>
    %26 = vector.broadcast %20 : vector<1x8xf32> to vector<8x8xf32>
    %27 = arith.addf %25, %26 : vector<8x8xf32>
    %28 = arith.addf %27, %24 : vector<8x8xf32>
    %cst_20 = arith.constant 0.000000e+00 : f32
    %29 = vector.broadcast %cst_20 : f32 to vector<8x8xf32>
    %30 = arith.cmpf oge, %28, %29 : vector<8x8xf32>
    %cst_21 = arith.constant 2.000000e-01 : f32
    %31 = vector.broadcast %cst_21 : f32 to vector<8x8xf32>
    %32 = arith.mulf %31, %28 : vector<8x8xf32>
    %33 = arith.select %30, %28, %32 : vector<8x8xi1>, vector<8x8xf32>
    %cst_22 = arith.constant dense<0.000000e+00> : vector<16x8xf32>
    %34 = tpu.matmul %21, %33, %cst_22 {dimension_numbers = #tpu.dot_dimension_numbers<[1], [0], [0], [1], [0, 0, 1, 1], [], []>} : vector<16x8xf32>, vector<8x8xf32>, vector<16x8xf32> -> vector<16x8xf32>
    %35 = vector.broadcast %22 : vector<16x1xf32> to vector<16x8xf32>
    %36 = arith.addf %34, %35 : vector<16x8xf32>
    %c96 = arith.constant 96 : index
    %c0_23 = arith.constant 0 : index
    %37 = vector.load %arg4[%c96, %c0_23] : memref<336x8xf32, #tpu.memory_space<vmem>>, vector<8x8xf32>
    %c104 = arith.constant 104 : index
    %c0_24 = arith.constant 0 : index
    %38 = vector.load %arg4[%c104, %c0_24] : memref<336x8xf32, #tpu.memory_space<vmem>>, vector<1x8xf32>
    %c112 = arith.constant 112 : index
    %c0_25 = arith.constant 0 : index
    %39 = vector.load %arg4[%c112, %c0_25] : memref<336x8xf32, #tpu.memory_space<vmem>>, vector<16x4xf32>
    %c128 = arith.constant 128 : index
    %c0_26 = arith.constant 0 : index
    %40 = vector.load %arg4[%c128, %c0_26] : memref<336x8xf32, #tpu.memory_space<vmem>>, vector<16x1xf32>
    %41 = vector.shape_cast %18 : vector<16x8xf32> to vector<4x4x8xf32>
    %cst_27 = arith.constant dense<0xFF800000> : vector<4x8xf32>
    %42 = vector.multi_reduction <maximumf>, %41, %cst_27 [1] : vector<4x4x8xf32> to vector<4x8xf32>
    %cst_28 = arith.constant dense<0.000000e+00> : vector<4x8xf32>
    %43 = tpu.matmul %42, %37, %cst_28 {dimension_numbers = #tpu.dot_dimension_numbers<[1], [0], [0], [1], [0, 0, 1, 1], [], []>} : vector<4x8xf32>, vector<8x8xf32>, vector<4x8xf32> -> vector<4x8xf32>
    %44 = vector.broadcast %38 : vector<1x8xf32> to vector<4x8xf32>
    %45 = arith.addf %43, %44 : vector<4x8xf32>
    %46 = arith.addf %45, %42 : vector<4x8xf32>
    %cst_29 = arith.constant 0.000000e+00 : f32
    %47 = vector.broadcast %cst_29 : f32 to vector<4x8xf32>
    %48 = arith.cmpf oge, %46, %47 : vector<4x8xf32>
    %cst_30 = arith.constant 2.000000e-01 : f32
    %49 = vector.broadcast %cst_30 : f32 to vector<4x8xf32>
    %50 = arith.mulf %49, %46 : vector<4x8xf32>
    %51 = arith.select %48, %46, %50 : vector<4x8xi1>, vector<4x8xf32>
    %cst_31 = arith.constant dense<0.000000e+00> : vector<16x8xf32>
    %52 = tpu.matmul %39, %51, %cst_31 {dimension_numbers = #tpu.dot_dimension_numbers<[1], [0], [0], [1], [0, 0, 1, 1], [], []>} : vector<16x4xf32>, vector<4x8xf32>, vector<16x8xf32> -> vector<16x8xf32>
    %53 = vector.broadcast %40 : vector<16x1xf32> to vector<16x8xf32>
    %54 = arith.addf %52, %53 : vector<16x8xf32>
    %55 = arith.addf %36, %54 : vector<16x8xf32>
    %c144 = arith.constant 144 : index
    %c0_32 = arith.constant 0 : index
    %56 = vector.load %arg4[%c144, %c0_32] : memref<336x8xf32, #tpu.memory_space<vmem>>, vector<8x8xf32>
    %c152 = arith.constant 152 : index
    %c0_33 = arith.constant 0 : index
    %57 = vector.load %arg4[%c152, %c0_33] : memref<336x8xf32, #tpu.memory_space<vmem>>, vector<1x8xf32>
    %c160 = arith.constant 160 : index
    %c0_34 = arith.constant 0 : index
    %58 = vector.load %arg4[%c160, %c0_34] : memref<336x8xf32, #tpu.memory_space<vmem>>, vector<16x2xf32>
    %c176 = arith.constant 176 : index
    %c0_35 = arith.constant 0 : index
    %59 = vector.load %arg4[%c176, %c0_35] : memref<336x8xf32, #tpu.memory_space<vmem>>, vector<16x1xf32>
    %60 = vector.shape_cast %18 : vector<16x8xf32> to vector<2x8x8xf32>
    %cst_36 = arith.constant dense<0xFF800000> : vector<2x8xf32>
    %61 = vector.multi_reduction <maximumf>, %60, %cst_36 [1] : vector<2x8x8xf32> to vector<2x8xf32>
    %cst_37 = arith.constant dense<0.000000e+00> : vector<2x8xf32>
    %62 = tpu.matmul %61, %56, %cst_37 {dimension_numbers = #tpu.dot_dimension_numbers<[1], [0], [0], [1], [0, 0, 1, 1], [], []>} : vector<2x8xf32>, vector<8x8xf32>, vector<2x8xf32> -> vector<2x8xf32>
    %63 = vector.broadcast %57 : vector<1x8xf32> to vector<2x8xf32>
    %64 = arith.addf %62, %63 : vector<2x8xf32>
    %65 = arith.addf %64, %61 : vector<2x8xf32>
    %cst_38 = arith.constant 0.000000e+00 : f32
    %66 = vector.broadcast %cst_38 : f32 to vector<2x8xf32>
    %67 = arith.cmpf oge, %65, %66 : vector<2x8xf32>
    %cst_39 = arith.constant 2.000000e-01 : f32
    %68 = vector.broadcast %cst_39 : f32 to vector<2x8xf32>
    %69 = arith.mulf %68, %65 : vector<2x8xf32>
    %70 = arith.select %67, %65, %69 : vector<2x8xi1>, vector<2x8xf32>
    %cst_40 = arith.constant dense<0.000000e+00> : vector<16x8xf32>
    %71 = tpu.matmul %58, %70, %cst_40 {dimension_numbers = #tpu.dot_dimension_numbers<[1], [0], [0], [1], [0, 0, 1, 1], [], []>} : vector<16x2xf32>, vector<2x8xf32>, vector<16x8xf32> -> vector<16x8xf32>
    %72 = vector.broadcast %59 : vector<16x1xf32> to vector<16x8xf32>
    %73 = arith.addf %71, %72 : vector<16x8xf32>
    %74 = arith.addf %55, %73 : vector<16x8xf32>
    %c192 = arith.constant 192 : index
    %c0_41 = arith.constant 0 : index
    %75 = vector.load %arg4[%c192, %c0_41] : memref<336x8xf32, #tpu.memory_space<vmem>>, vector<8x8xf32>
    %c200 = arith.constant 200 : index
    %c0_42 = arith.constant 0 : index
    %76 = vector.load %arg4[%c200, %c0_42] : memref<336x8xf32, #tpu.memory_space<vmem>>, vector<1x8xf32>
    %c208 = arith.constant 208 : index
    %c0_43 = arith.constant 0 : index
    %77 = vector.load %arg4[%c208, %c0_43] : memref<336x8xf32, #tpu.memory_space<vmem>>, vector<16x8xf32>
    %c224 = arith.constant 224 : index
    %c0_44 = arith.constant 0 : index
    %78 = vector.load %arg4[%c224, %c0_44] : memref<336x8xf32, #tpu.memory_space<vmem>>, vector<16x1xf32>
    %79 = vector.shape_cast %74 : vector<16x8xf32> to vector<8x2x8xf32>
    %cst_45 = arith.constant dense<0xFF800000> : vector<8x8xf32>
    %80 = vector.multi_reduction <maximumf>, %79, %cst_45 [1] : vector<8x2x8xf32> to vector<8x8xf32>
    %cst_46 = arith.constant dense<0.000000e+00> : vector<8x8xf32>
    %81 = tpu.matmul %80, %75, %cst_46 {dimension_numbers = #tpu.dot_dimension_numbers<[1], [0], [0], [1], [0, 0, 1, 1], [], []>} : vector<8x8xf32>, vector<8x8xf32>, vector<8x8xf32> -> vector<8x8xf32>
    %82 = vector.broadcast %76 : vector<1x8xf32> to vector<8x8xf32>
    %83 = arith.addf %81, %82 : vector<8x8xf32>
    %84 = arith.addf %83, %80 : vector<8x8xf32>
    %cst_47 = arith.constant 0.000000e+00 : f32
    %85 = vector.broadcast %cst_47 : f32 to vector<8x8xf32>
    %86 = arith.cmpf oge, %84, %85 : vector<8x8xf32>
    %cst_48 = arith.constant 2.000000e-01 : f32
    %87 = vector.broadcast %cst_48 : f32 to vector<8x8xf32>
    %88 = arith.mulf %87, %84 : vector<8x8xf32>
    %89 = arith.select %86, %84, %88 : vector<8x8xi1>, vector<8x8xf32>
    %cst_49 = arith.constant dense<0.000000e+00> : vector<16x8xf32>
    %90 = tpu.matmul %77, %89, %cst_49 {dimension_numbers = #tpu.dot_dimension_numbers<[1], [0], [0], [1], [0, 0, 1, 1], [], []>} : vector<16x8xf32>, vector<8x8xf32>, vector<16x8xf32> -> vector<16x8xf32>
    %91 = vector.broadcast %78 : vector<16x1xf32> to vector<16x8xf32>
    %92 = arith.addf %90, %91 : vector<16x8xf32>
    %c240 = arith.constant 240 : index
    %c0_50 = arith.constant 0 : index
    %93 = vector.load %arg4[%c240, %c0_50] : memref<336x8xf32, #tpu.memory_space<vmem>>, vector<8x8xf32>
    %c248 = arith.constant 248 : index
    %c0_51 = arith.constant 0 : index
    %94 = vector.load %arg4[%c248, %c0_51] : memref<336x8xf32, #tpu.memory_space<vmem>>, vector<1x8xf32>
    %c256 = arith.constant 256 : index
    %c0_52 = arith.constant 0 : index
    %95 = vector.load %arg4[%c256, %c0_52] : memref<336x8xf32, #tpu.memory_space<vmem>>, vector<16x4xf32>
    %c272 = arith.constant 272 : index
    %c0_53 = arith.constant 0 : index
    %96 = vector.load %arg4[%c272, %c0_53] : memref<336x8xf32, #tpu.memory_space<vmem>>, vector<16x1xf32>
    %97 = vector.shape_cast %74 : vector<16x8xf32> to vector<4x4x8xf32>
    %cst_54 = arith.constant dense<0xFF800000> : vector<4x8xf32>
    %98 = vector.multi_reduction <maximumf>, %97, %cst_54 [1] : vector<4x4x8xf32> to vector<4x8xf32>
    %cst_55 = arith.constant dense<0.000000e+00> : vector<4x8xf32>
    %99 = tpu.matmul %98, %93, %cst_55 {dimension_numbers = #tpu.dot_dimension_numbers<[1], [0], [0], [1], [0, 0, 1, 1], [], []>} : vector<4x8xf32>, vector<8x8xf32>, vector<4x8xf32> -> vector<4x8xf32>
    %100 = vector.broadcast %94 : vector<1x8xf32> to vector<4x8xf32>
    %101 = arith.addf %99, %100 : vector<4x8xf32>
    %102 = arith.addf %101, %98 : vector<4x8xf32>
    %cst_56 = arith.constant 0.000000e+00 : f32
    %103 = vector.broadcast %cst_56 : f32 to vector<4x8xf32>
    %104 = arith.cmpf oge, %102, %103 : vector<4x8xf32>
    %cst_57 = arith.constant 2.000000e-01 : f32
    %105 = vector.broadcast %cst_57 : f32 to vector<4x8xf32>
    %106 = arith.mulf %105, %102 : vector<4x8xf32>
    %107 = arith.select %104, %102, %106 : vector<4x8xi1>, vector<4x8xf32>
    %cst_58 = arith.constant dense<0.000000e+00> : vector<16x8xf32>
    %108 = tpu.matmul %95, %107, %cst_58 {dimension_numbers = #tpu.dot_dimension_numbers<[1], [0], [0], [1], [0, 0, 1, 1], [], []>} : vector<16x4xf32>, vector<4x8xf32>, vector<16x8xf32> -> vector<16x8xf32>
    %109 = vector.broadcast %96 : vector<16x1xf32> to vector<16x8xf32>
    %110 = arith.addf %108, %109 : vector<16x8xf32>
    %111 = arith.addf %92, %110 : vector<16x8xf32>
    %c288 = arith.constant 288 : index
    %c0_59 = arith.constant 0 : index
    %112 = vector.load %arg4[%c288, %c0_59] : memref<336x8xf32, #tpu.memory_space<vmem>>, vector<8x8xf32>
    %c296 = arith.constant 296 : index
    %c0_60 = arith.constant 0 : index
    %113 = vector.load %arg4[%c296, %c0_60] : memref<336x8xf32, #tpu.memory_space<vmem>>, vector<1x8xf32>
    %c304 = arith.constant 304 : index
    %c0_61 = arith.constant 0 : index
    %114 = vector.load %arg4[%c304, %c0_61] : memref<336x8xf32, #tpu.memory_space<vmem>>, vector<16x2xf32>
    %c320 = arith.constant 320 : index
    %c0_62 = arith.constant 0 : index
    %115 = vector.load %arg4[%c320, %c0_62] : memref<336x8xf32, #tpu.memory_space<vmem>>, vector<16x1xf32>
    %116 = vector.shape_cast %74 : vector<16x8xf32> to vector<2x8x8xf32>
    %cst_63 = arith.constant dense<0xFF800000> : vector<2x8xf32>
    %117 = vector.multi_reduction <maximumf>, %116, %cst_63 [1] : vector<2x8x8xf32> to vector<2x8xf32>
    %cst_64 = arith.constant dense<0.000000e+00> : vector<2x8xf32>
    %118 = tpu.matmul %117, %112, %cst_64 {dimension_numbers = #tpu.dot_dimension_numbers<[1], [0], [0], [1], [0, 0, 1, 1], [], []>} : vector<2x8xf32>, vector<8x8xf32>, vector<2x8xf32> -> vector<2x8xf32>
    %119 = vector.broadcast %113 : vector<1x8xf32> to vector<2x8xf32>
    %120 = arith.addf %118, %119 : vector<2x8xf32>
    %121 = arith.addf %120, %117 : vector<2x8xf32>
    %cst_65 = arith.constant 0.000000e+00 : f32
    %122 = vector.broadcast %cst_65 : f32 to vector<2x8xf32>
    %123 = arith.cmpf oge, %121, %122 : vector<2x8xf32>
    %cst_66 = arith.constant 2.000000e-01 : f32
    %124 = vector.broadcast %cst_66 : f32 to vector<2x8xf32>
    %125 = arith.mulf %124, %121 : vector<2x8xf32>
    %126 = arith.select %123, %121, %125 : vector<2x8xi1>, vector<2x8xf32>
    %cst_67 = arith.constant dense<0.000000e+00> : vector<16x8xf32>
    %127 = tpu.matmul %114, %126, %cst_67 {dimension_numbers = #tpu.dot_dimension_numbers<[1], [0], [0], [1], [0, 0, 1, 1], [], []>} : vector<16x2xf32>, vector<2x8xf32>, vector<16x8xf32> -> vector<16x8xf32>
    %128 = vector.broadcast %115 : vector<16x1xf32> to vector<16x8xf32>
    %129 = arith.addf %127, %128 : vector<16x8xf32>
    %130 = arith.addf %111, %129 : vector<16x8xf32>
    %cst_68 = arith.constant dense<0.000000e+00> : vector<8x256xf32>
    %131 = tpu.matmul %130, %12, %cst_68 {dimension_numbers = #tpu.dot_dimension_numbers<[0], [0], [1], [1], [0, 1, 1, 1], [], []>} : vector<16x8xf32>, vector<16x256xf32>, vector<8x256xf32> -> vector<8x256xf32>
    %c40 = arith.constant 40 : index
    %c0_69 = arith.constant 0 : index
    %132 = vector.load %arg3[%c40, %c0_69] : memref<48x8xbf16, #tpu.memory_space<vmem>>, vector<8x8xbf16>
    %133 = arith.truncf %131 : vector<8x256xf32> to vector<8x256xbf16>
    %cst_70 = arith.constant dense<0.000000e+00> : vector<8x256xf32>
    %134 = tpu.matmul %132, %133, %cst_70 {dimension_numbers = #tpu.dot_dimension_numbers<[1], [0], [0], [1], [0, 0, 1, 1], [], []>} : vector<8x8xbf16>, vector<8x256xbf16>, vector<8x256xf32> -> vector<8x256xf32>
    %c40_71 = arith.constant 40 : index
    %c0_72 = arith.constant 0 : index
    %135 = vector.load %arg4[%c40_71, %c0_72] : memref<336x8xf32, #tpu.memory_space<vmem>>, vector<8x1xf32>
    %136 = vector.broadcast %135 : vector<8x1xf32> to vector<8x256xf32>
    %137 = arith.addf %134, %136 : vector<8x256xf32>
    %138 = arith.addf %1, %137 : vector<8x256xf32>
    %139 = arith.addf %138, %3 : vector<8x256xf32>
    %c0_73 = arith.constant 0 : index
    %c0_74 = arith.constant 0 : index
    %c0_75 = arith.constant 0 : index
    %140 = vector.load %arg5[%c0_73, %c0_74, %c0_75] : memref<1x8x256xf32, #tpu.memory_space<vmem>>, vector<1x8x256xf32>
    %141 = vector.shape_cast %140 : vector<1x8x256xf32> to vector<8x256xf32>
    %142 = vector.shape_cast %139 : vector<8x256xf32> to vector<1x8x256xf32>
    tpu.vector_store %arg5[%c0_73, %c0_74, %c0_75], %142 {strides = array<i32>} : memref<1x8x256xf32, #tpu.memory_space<vmem>>, vector<1x8x256xf32>,
    return
  }
  func.func @transform_0(%arg0: i32) -> (i32, i32, i32) {
    %c0_i32 = arith.constant 0 : i32
    %c0_i32_0 = arith.constant 0 : i32
    %c0_i32_1 = arith.constant 0 : i32
    return %arg0, %c0_i32, %c0_i32_0 : i32, i32, i32
  }
  func.func @transform_1(%arg0: i32) -> (i32, i32, i32) {
    %c0_i32 = arith.constant 0 : i32
    %c0_i32_0 = arith.constant 0 : i32
    %c0_i32_1 = arith.constant 0 : i32
    return %arg0, %c0_i32, %c0_i32_0 : i32, i32, i32
  }
  func.func @transform_2(%arg0: i32) -> (i32, i32) {
    %c0_i32 = arith.constant 0 : i32
    %c0_i32_0 = arith.constant 0 : i32
    %c0_i32_1 = arith.constant 0 : i32
    return %c0_i32, %c0_i32_0 : i32, i32
  }
  func.func @transform_3(%arg0: i32) -> (i32, i32) {
    %c0_i32 = arith.constant 0 : i32
    %c0_i32_0 = arith.constant 0 : i32
    %c0_i32_1 = arith.constant 0 : i32
    return %c0_i32, %c0_i32_0 : i32, i32
  }
  func.func @transform_4(%arg0: i32) -> (i32, i32, i32) {
    %c0_i32 = arith.constant 0 : i32
    %c0_i32_0 = arith.constant 0 : i32
    %c0_i32_1 = arith.constant 0 : i32
    return %arg0, %c0_i32, %c0_i32_0 : i32, i32, i32
  }
}

</mosaic_0001>

<llo_original>
// kernel: gru_forward.1
$region0: #{gru_forward.1}
  #allocation0 [shape = 'u32[]', space=smem, size = 0x4, offset = 0x4, fixed_abs, tag = 'smem constant byte address 0x4 - core index']
  #allocation1 [shape = 'u32[144,128]{1,0:T(1,128)}', space=vmem, size = 0x12000, scoped, tag = 'internal scratch']
  %s0 = inlined_call_operand.vmem [shape: f32[2,8,256], index: 0, kind: input, shape index: {}]
  %s1 = inlined_call_operand.vmem [shape: f32[2,8,256], index: 1, kind: input, shape index: {}]
  %s2 = inlined_call_operand.vmem [shape: bf16[48,8], index: 2, kind: input, shape index: {}]
  %s3 = inlined_call_operand.vmem [shape: f32[336,8], index: 3, kind: input, shape index: {}]
  %s4 = inlined_call_operand.vmem [shape: f32[2,8,256], index: 4, kind: output, shape index: {}]
  %s5 = sld [smem:[#allocation0]]
  $region49: #{gru_forward.1} parent=0
    _
  %s7 = ssub.s32 1, %s5
  %s8 = scalar_select 0, %s7, %s5
  loop: start=0, step=1, limit=4
  $region2: #{gru_forward.1} parent=0 // loop_pre_header
    _
  $region3: #{gru_forward.1} parent=0 // loop_header
    %s10 = sphi 0, %s14
    %p11 = scmp.ge.s32.totalorder %s10, 4
    %s20 = sphi 0, %s22
    %s23 = sphi 0, %s20
    %s24 = sphi 0, %s23
    %s40 = sphi 0, %s24
    %s46 = sphi 0, %s48
    %s49 = sphi 0, %s46
    %s50 = sphi 0, %s49
    %s66 = sphi 0, %s50
    %s70 = sphi 0, %s70
    %s72 = sphi 0, %s70
    %s73 = sphi 0, %s72
    %s87 = sphi 0, %s73
    %s91 = sphi 0, %s91
    %s93 = sphi 0, %s91
    %s94 = sphi 0, %s93
    %s108 = sphi 0, %s94
    %s114 = sphi 0, %s116
    %s117 = sphi 0, %s114
    %s118 = sphi 0, %s117
    %s134 = sphi 0, %s118
  $region4: #{gru_forward.1} parent=0 // loop_header_branch
    %13 = sbr.rel (%p11) target = $region8
  $region5: #{gru_forward.1} parent=0 // loop_body
    %s15 = ssub.s32 %s10, 1
    %s16 = ssub.s32 %s10, 2
    %s17 = sadd.s32 %s10, 1
    %s18 = ssub.s32 %s10, %s17
    %p19 = scmp.eq.s32.totalorder %s18, 0
    %s21 = sadd.s32 %s20, 1
    %s22 = scalar_select %p19, %s20, %s21
    %p25 = pneg %p19
    %p26 = scmp.eq.s32.totalorder %s10, 1
    %p27 = por %p25, %p26
    %p28 = scmp.ne.s32.totalorder %s20, %s23
    %p29 = scmp.eq.s32.totalorder %s10, 0
    %p30 = por %p28, %p29
    %p31 = scmp.ne.s32.totalorder %s20, %s23
    %p32 = scmp.eq.s32.totalorder %s15, 1
    %p33 = por %p31, %p32
    %p34 = scmp.ne.s32.totalorder %s23, %s24
    %p35 = scmp.eq.s32.totalorder %s15, 0
    %p36 = por %p34, %p35
    %p37 = scmp.ne.s32.totalorder %s23, %s24
    %p38 = scmp.eq.s32.totalorder %s16, 1
    %p39 = por %p37, %p38
    %p41 = scmp.ne.s32.totalorder %s24, %s40
    %p42 = scmp.eq.s32.totalorder %s16, 0
    %p43 = por %p41, %p42
    %s44 = ssub.s32 %s10, %s17
    %p45 = scmp.eq.s32.totalorder %s44, 0
    %s47 = sadd.s32 %s46, 1
    %s48 = scalar_select %p45, %s46, %s47
    %p51 = pneg %p45
    %p52 = scmp.eq.s32.totalorder %s10, 1
    %p53 = por %p51, %p52
    %p54 = scmp.ne.s32.totalorder %s46, %s49
    %p55 = scmp.eq.s32.totalorder %s10, 0
    %p56 = por %p54, %p55
    %p57 = scmp.ne.s32.totalorder %s46, %s49
    %p58 = scmp.eq.s32.totalorder %s15, 1
    %p59 = por %p57, %p58
    %p60 = scmp.ne.s32.totalorder %s49, %s50
    %p61 = scmp.eq.s32.totalorder %s15, 0
    %p62 = por %p60, %p61
    %p63 = scmp.ne.s32.totalorder %s49, %s50
    %p64 = scmp.eq.s32.totalorder %s16, 1
    %p65 = por %p63, %p64
    %p67 = scmp.ne.s32.totalorder %s50, %s66
    %p68 = scmp.eq.s32.totalorder %s16, 0
    %p69 = por %p67, %p68
    %s71 = sadd.s32 %s70, 1
    %p74 = scmp.eq.s32.totalorder %s10, 1
    %p75 = scmp.ne.s32.totalorder %s70, %s72
    %p76 = scmp.eq.s32.totalorder %s10, 0
    %p77 = por %p75, %p76
    %p78 = scmp.ne.s32.totalorder %s70, %s72
    %p79 = scmp.eq.s32.totalorder %s15, 1
    %p80 = por %p78, %p79
    %p81 = scmp.ne.s32.totalorder %s72, %s73
    %p82 = scmp.eq.s32.totalorder %s15, 0
    %p83 = por %p81, %p82
    %p84 = scmp.ne.s32.totalorder %s72, %s73
    %p85 = scmp.eq.s32.totalorder %s16, 1
    %p86 = por %p84, %p85
    %p88 = scmp.ne.s32.totalorder %s73, %s87
    %p89 = scmp.eq.s32.totalorder %s16, 0
    %p90 = por %p88, %p89
    %s92 = sadd.s32 %s91, 1
    %p95 = scmp.eq.s32.totalorder %s10, 1
    %p96 = scmp.ne.s32.totalorder %s91, %s93
    %p97 = scmp.eq.s32.totalorder %s10, 0
    %p98 = por %p96, %p97
    %p99 = scmp.ne.s32.totalorder %s91, %s93
    %p100 = scmp.eq.s32.totalorder %s15, 1
    %p101 = por %p99, %p100
    %p102 = scmp.ne.s32.totalorder %s93, %s94
    %p103 = scmp.eq.s32.totalorder %s15, 0
    %p104 = por %p102, %p103
    %p105 = scmp.ne.s32.totalorder %s93, %s94
    %p106 = scmp.eq.s32.totalorder %s16, 1
    %p107 = por %p105, %p106
    %p109 = scmp.ne.s32.totalorder %s94, %s108
    %p110 = scmp.eq.s32.totalorder %s16, 0
    %p111 = por %p109, %p110
    %s112 = ssub.s32 %s10, %s17
    %p113 = scmp.eq.s32.totalorder %s112, 0
    %s115 = sadd.s32 %s114, 1
    %s116 = scalar_select %p113, %s114, %s115
    %p119 = pneg %p113
    %p120 = scmp.eq.s32.totalorder %s10, 1
    %p121 = por %p119, %p120
    %p122 = scmp.ne.s32.totalorder %s114, %s117
    %p123 = scmp.eq.s32.totalorder %s10, 0
    %p124 = por %p122, %p123
    %p125 = scmp.ne.s32.totalorder %s114, %s117
    %p126 = scmp.eq.s32.totalorder %s15, 1
    %p127 = por %p125, %p126
    %p128 = scmp.ne.s32.totalorder %s117, %s118
    %p129 = scmp.eq.s32.totalorder %s15, 0
    %p130 = por %p128, %p129
    %p131 = scmp.ne.s32.totalorder %s117, %s118
    %p132 = scmp.eq.s32.totalorder %s16, 1
    %p133 = por %p131, %p132
    %p135 = scmp.ne.s32.totalorder %s118, %s134
    %p136 = scmp.eq.s32.totalorder %s16, 0
    %p137 = por %p135, %p136
    %p138 = scmp.le.s32.totalorder 1, %s10
    %p139 = scmp.lt.s32.totalorder %s10, 3
    %p140 = pnand %p138, %p139
    %p141 = pneg %p140
    // Predicated region
    $region9: #{gru_forward.1} parent=5 // pred_check
      _
    $region10: #{gru_forward.1} parent=5 // pred_check_branch
      %143 = sbr.rel (%p140) target = $region12
    $region11: #{gru_forward.1} parent=5 // pred_region
      %s144 = ssub.s32 %s10, 1
      // Predicated region
      $region13: #{gru_forward.1} parent=11 // pred_check
        %p145 = pneg %p83
      $region14: #{gru_forward.1} parent=11 // pred_check_branch
        %147 = sbr.rel (%p145) target = $region16
      $region15: #{gru_forward.1} parent=11 // pred_region
        _
      $region16: #{gru_forward.1} parent=11 // pred_fallthru
        _
      // Predicated region
      $region17: #{gru_forward.1} parent=11 // pred_check
        %p148 = pneg %p104
      $region18: #{gru_forward.1} parent=11 // pred_check_branch
        %150 = sbr.rel (%p148) target = $region20
      $region19: #{gru_forward.1} parent=11 // pred_region
        _
      $region20: #{gru_forward.1} parent=11 // pred_fallthru
        _
    $region12: #{gru_forward.1} parent=5 // pred_fallthru
      _
    %p151 = scmp.lt.s32.totalorder %s10, 2
    // Predicated region
    $region21: #{gru_forward.1} parent=5 // pred_check
      %p152 = pneg %p151
    $region22: #{gru_forward.1} parent=5 // pred_check_branch
      %154 = sbr.rel (%p152) target = $region24
    $region23: #{gru_forward.1} parent=5 // pred_region
      // Predicated region
      $region25: #{gru_forward.1} parent=23 // pred_check
        %p155 = pneg %p30
      $region26: #{gru_forward.1} parent=23 // pred_check_branch
        %157 = sbr.rel (%p155) target = $region28
      $region27: #{gru_forward.1} parent=23 // pred_region
        %p158 = scmp.lt.s32.totalorder %s10, 1
        %s159 = scalar_select %p158, %s10, 1
        %s160 = smul.addr %s159, 2
        %s161 = smul.addr %s160, 8
        %s162 = scalar_lea.vmem %s0, %s161
      $region28: #{gru_forward.1} parent=23 // pred_fallthru
        _
      // Predicated region
      $region29: #{gru_forward.1} parent=23 // pred_check
        %p163 = pneg %p56
      $region30: #{gru_forward.1} parent=23 // pred_check_branch
        %165 = sbr.rel (%p163) target = $region32
      $region31: #{gru_forward.1} parent=23 // pred_region
        %p166 = scmp.lt.s32.totalorder %s10, 1
        %s167 = scalar_select %p166, %s10, 1
        %s168 = smul.addr %s167, 2
        %s169 = smul.addr %s168, 8
        %s170 = scalar_lea.vmem %s1, %s169
      $region32: #{gru_forward.1} parent=23 // pred_fallthru
        _
    $region24: #{gru_forward.1} parent=5 // pred_fallthru
      _
    %p171 = scmp.le.s32.totalorder 1, %s10
    %p172 = scmp.lt.s32.totalorder %s10, 3
    %p173 = pnand %p171, %p172
    %p174 = pneg %p173
    // Predicated region
    $region33: #{gru_forward.1} parent=5 // pred_check
      _
    $region34: #{gru_forward.1} parent=5 // pred_check_branch
      %176 = sbr.rel (%p173) target = $region36
    $region35: #{gru_forward.1} parent=5 // pred_region
      %s177 = ssub.s32 %s10, 1
      %p178 = scmp.lt.s32.totalorder %s15, 1
      %s179 = scalar_select %p178, %s15, 1
      %s180 = smul.addr %s179, 2
      %s181 = smul.addr %s180, 8
      %s182 = scalar_lea.vmem %s0, %s181
      %p183 = pneg %p36
      %p184 = pneg %p33
      %p185 = scmp.lt.s32.totalorder %s15, 1
      %s186 = scalar_select %p185, %s15, 1
      %s187 = smul.addr %s186, 2
      %s188 = smul.addr %s187, 8
      %s189 = scalar_lea.vmem %s1, %s188
      %p190 = pneg %p62
      %p191 = pneg %p59
      %p192 = pneg %p83
      %p193 = pneg %p80
      %p194 = pneg %p104
      %p195 = pneg %p101
      %p196 = pneg %p130
      %p197 = pneg %p127
      %p198 = scmp.lt.s32.totalorder %s15, 1
      %s199 = scalar_select %p198, %s15, 1
      %s200 = smul.addr %s199, 2
      %s201 = smul.addr %s200, 8
      %s202 = scalar_lea.vmem %s4, %s201
      %p203 = scmp.lt.s32.totalorder %s15, 1
      %s204 = scalar_select %p203, %s15, 1
      %s205 = smul.addr %s204, 2
      %s206 = smul.addr %s205, 8
      %s207 = scalar_lea.vmem %s0, %s206
      %p208 = scmp.lt.s32.totalorder %s15, 1
      %s209 = scalar_select %p208, %s15, 1
      %s210 = smul.addr %s209, 2
      %s211 = smul.addr %s210, 8
      %s212 = scalar_lea.vmem %s1, %s211
      %p213 = scmp.lt.s32.totalorder %s15, 1
      %s214 = scalar_select %p213, %s15, 1
      %s215 = smul.addr %s214, 2
      %s216 = smul.addr %s215, 8
      %s217 = scalar_lea.vmem %s4, %s216
      %v219 = vld [vmem:[%s207] sm:$0xff]
      %v220 = vld [vmem:[%s207 + $0x8] sm:$0xff]
      %v221 = vld [vmem:[%s212] sm:$0xff]
      %v222 = vld [vmem:[%s212 + $0x8] sm:$0xff]
      %v223 = vpack.c.bf16 %v219, %v219
      %v224 = vpack.c.bf16 %v220, %v220
      %v225 = vpack.c.bf16 %v221, %v221
      %v226 = vpack.c.bf16 %v222, %v222
      %v227 = vld [vmem:[%s2] sm:$0xf]
      %v228 = vld [vmem:[%s2 + $0x4] sm:$0xf]
      %v229 = vld [vmem:[%s2 + $0x8] sm:$0xf]
      %v230 = vld [vmem:[%s2 + $0xc] sm:$0xf]
      %v231 = vld [vmem:[%s3] sm:$0xff]
      %v232 = vld [vmem:[%s3 + $0x8] sm:$0xff]
      %v233 = vld [vmem:[%s3 + $0x10] sm:$0xff]
      %v234 = vld [vmem:[%s3 + $0x18] sm:$0xff]
      %236 = vset.pattern.permute.xlu0 0
      %237 = vperm.xlu0 %236, %v231
      %v238 = vpop.permute.xlu0 %237
      %241 = vset.pattern.permute.xlu0 0
      %242 = vperm.xlu0 %241, %v232
      %v243 = vpop.permute.xlu0 %242
      %246 = vset.pattern.permute.xlu0 0
      %247 = vperm.xlu0 %246, %v233
      %v248 = vpop.permute.xlu0 %247
      %251 = vset.pattern.permute.xlu0 0
      %252 = vperm.xlu0 %251, %v234
      %v253 = vpop.permute.xlu0 %252
      %v259 = vunpack.c.l.b16 %v227
      %v260 = vunpack.c.l.b16 %v228
      %v261 = vunpack.c.l.b16 %v229
      %v262 = vunpack.c.l.b16 %v230
      %v263 = vpack.c.b16 %v260, %v259
      %v264 = vpack.c.b16 %v262, %v261
      %vm265 = vcmask 64512
      %v267 = vsel %vm265, %v263, 0
      %v270 = vsel %vm265, %v264, 0
      %vm272 = vcmask 1043456
      %v274 = vsel %vm272, %v223, 0
      %v277 = vsel %vm272, %v224, 0
      %279 = vmatprep.subr.bf16.mxu0 %v277
      %280 = vmatpush1.bf16.msra.mxu0 %v274
      %281 = vmatprep.subr.bf16.mxu0 0
      %282 = vmatpush1.bf16.msra.mxu0 0
      %283 = vmatprep.subr.bf16.mxu0 0
      %284 = vmatpush1.bf16.msra.mxu0 0
      %285 = vmatprep.subr.bf16.mxu0 0
      %286 = vmatpush1.bf16.msra.mxu0 0
      %287 = vmatprep.subr.bf16.mxu0 0
      %288 = vmatpush1.bf16.msra.mxu0 0
      %289 = vmatprep.subr.bf16.mxu0 0
      %290 = vmatpush1.bf16.msra.mxu0 0
      %291 = vmatprep.subr.bf16.mxu0 0
      %292 = vmatpush1.bf16.msra.mxu0 0
      %293 = vmatprep.subr.bf16.mxu0 0
      %294 = vmatpush1.bf16.msra.mxu0 0
      %295 = vmatprep.subr.bf16.mxu0 0
      %296 = vmatpush1.bf16.msra.mxu0 0
      %297 = vmatprep.subr.bf16.mxu0 0
      %298 = vmatpush1.bf16.msra.mxu0 0
      %299 = vmatprep.subr.bf16.mxu0 0
      %300 = vmatpush1.bf16.msra.mxu0 0
      %301 = vmatprep.subr.bf16.mxu0 0
      %302 = vmatpush1.bf16.msra.mxu0 0
      %303 = vmatprep.subr.bf16.mxu0 0
      %304 = vmatpush1.bf16.msra.mxu0 0
      %305 = vmatprep.subr.bf16.mxu0 0
      %306 = vmatpush1.bf16.msra.mxu0 0
      %307 = vmatprep.subr.bf16.mxu0 0
      %308 = vmatpush1.bf16.msra.mxu0 0
      %309 = vmatprep.subr.bf16.mxu0 0
      %310 = vmatpush1.bf16.msra.mxu0 0
      %311 = vmatprep.mubr.bf16.mxu0 0
      %312 = vmatmul.mubr.bf16.gmra.mrb[0].mxu0 %v267
      %v313 = vpop.f32.mrb[0].mxu0
      %v314 = vadd.f32 %v238, %v313
      %v315 = vpop.f32.mrb[0].mxu0
      %v316 = vadd.f32 %v238, %v315
      %v317 = vpop.f32.mrb[0].mxu0
      %v318 = vadd.f32 %v243, %v317
      %v319 = vpop.f32.mrb[0].mxu0
      %v320 = vadd.f32 %v243, %v319
      %321 = vmatprep.mubr.bf16.mxu0 0
      %322 = vmatmul.mubr.bf16.gmra.mrb[0].mxu0 %v270
      %v323 = vpop.f32.mrb[0].mxu0
      %v324 = vadd.f32 %v248, %v323
      %v325 = vpop.f32.mrb[0].mxu0
      %v326 = vadd.f32 %v248, %v325
      %v327 = vpop.f32.mrb[0].mxu0
      %v328 = vadd.f32 %v253, %v327
      %v329 = vpop.f32.mrb[0].mxu0
      %v330 = vadd.f32 %v253, %v329
      %331 = vdwg.mxu0
      %v332 = vld [vmem:[%s2 + $0x10] sm:$0xf]
      %v333 = vld [vmem:[%s3 + $0x20] sm:$0xff]
      %335 = vset.pattern.permute.xlu0 0
      %336 = vperm.xlu0 %335, %v333
      %v337 = vpop.permute.xlu0 %336
      %v340 = vsel %vm265, %v332, 0
      %v343 = vsel %vm272, %v225, 0
      %v346 = vsel %vm272, %v226, 0
      %348 = vmatprep.subr.bf16.mxu0 %v346
      %349 = vmatpush1.bf16.msra.mxu0 %v343
      %350 = vmatprep.subr.bf16.mxu0 0
      %351 = vmatpush1.bf16.msra.mxu0 0
      %352 = vmatprep.subr.bf16.mxu0 0
      %353 = vmatpush1.bf16.msra.mxu0 0
      %354 = vmatprep.subr.bf16.mxu0 0
      %355 = vmatpush1.bf16.msra.mxu0 0
      %356 = vmatprep.subr.bf16.mxu0 0
      %357 = vmatpush1.bf16.msra.mxu0 0
      %358 = vmatprep.subr.bf16.mxu0 0
      %359 = vmatpush1.bf16.msra.mxu0 0
      %360 = vmatprep.subr.bf16.mxu0 0
      %361 = vmatpush1.bf16.msra.mxu0 0
      %362 = vmatprep.subr.bf16.mxu0 0
      %363 = vmatpush1.bf16.msra.mxu0 0
      %364 = vmatprep.subr.bf16.mxu0 0
      %365 = vmatpush1.bf16.msra.mxu0 0
      %366 = vmatprep.subr.bf16.mxu0 0
      %367 = vmatpush1.bf16.msra.mxu0 0
      %368 = vmatprep.subr.bf16.mxu0 0
      %369 = vmatpush1.bf16.msra.mxu0 0
      %370 = vmatprep.subr.bf16.mxu0 0
      %371 = vmatpush1.bf16.msra.mxu0 0
      %372 = vmatprep.subr.bf16.mxu0 0
      %373 = vmatpush1.bf16.msra.mxu0 0
      %374 = vmatprep.subr.bf16.mxu0 0
      %375 = vmatpush1.bf16.msra.mxu0 0
      %376 = vmatprep.subr.bf16.mxu0 0
      %377 = vmatpush1.bf16.msra.mxu0 0
      %378 = vmatprep.subr.bf16.mxu0 0
      %379 = vmatpush1.bf16.msra.mxu0 0
      %380 = vmatprep.mubr.bf16.mxu0 0
      %381 = vmatmul.mubr.bf16.gmra.mrb[0].mxu0 %v340
      %v382 = vpop.f32.mrb[0].mxu0
      %v383 = vadd.f32 %v337, %v382
      %v384 = vpop.f32.mrb[0].mxu0
      %v385 = vadd.f32 %v337, %v384
      %v386 = vpop.f32.mrb[0].mxu0
      %v387 = vpop.f32.mrb[0].mxu0
      %388 = vdwg.mxu0
      %389 = vmatprep.subr.mxu0 %v385
      %390 = vmatpush1.xpose.msra.mxu0 %v383
      %391 = vmatprep.subr.mxu0 0.0
      %392 = vmatpush1.xpose.msra.mxu0 0.0
      %393 = vmatprep.subr.mxu0 0.0
      %394 = vmatpush1.xpose.msra.mxu0 0.0
      %395 = vmatprep.subr.mxu0 0.0
      %396 = vmatpush1.xpose.msra.mxu0 0.0
      %397 = vmatprep.subr.mxu0 0.0
      %398 = vmatpush1.xpose.msra.mxu0 0.0
      %399 = vmatprep.subr.mxu0 0.0
      %400 = vmatpush1.xpose.msra.mxu0 0.0
      %401 = vmatprep.subr.mxu0 0.0
      %402 = vmatpush1.xpose.msra.mxu0 0.0
      %403 = vmatprep.subr.mxu0 0.0
      %404 = vmatpush1.xpose.msra.mxu0 0.0
      %405 = vmatprep.subr.mxu0 0.0
      %406 = vmatpush1.xpose.msra.mxu0 0.0
      %407 = vmatprep.subr.mxu0 0.0
      %408 = vmatpush1.xpose.msra.mxu0 0.0
      %409 = vmatprep.subr.mxu0 0.0
      %410 = vmatpush1.xpose.msra.mxu0 0.0
      %411 = vmatprep.subr.mxu0 0.0
      %412 = vmatpush1.xpose.msra.mxu0 0.0
      %413 = vmatprep.subr.mxu0 0.0
      %414 = vmatpush1.xpose.msra.mxu0 0.0
      %415 = vmatprep.subr.mxu0 0.0
      %416 = vmatpush1.xpose.msra.mxu0 0.0
      %417 = vmatprep.subr.mxu0 0.0
      %418 = vmatpush1.xpose.msra.mxu0 0.0
      %419 = vmatprep.subr.mxu0 0.0
      %420 = vmatpush1.xpose.msra.mxu0 0.0
      %421 = vmatprep.subr.mxu0 0.0
      %422 = vmatpush1.xpose.msra.mxu0 0.0
      %423 = vmatprep.subr.mxu0 0.0
      %424 = vmatpush1.xpose.msra.mxu0 0.0
      %425 = vmatprep.subr.mxu0 0.0
      %426 = vmatpush1.xpose.msra.mxu0 0.0
      %427 = vmatprep.subr.mxu0 0.0
      %428 = vmatpush1.xpose.msra.mxu0 0.0
      %429 = vmatprep.subr.mxu0 0.0
      %430 = vmatpush1.xpose.msra.mxu0 0.0
      %431 = vmatprep.subr.mxu0 0.0
      %432 = vmatpush1.xpose.msra.mxu0 0.0
      %433 = vmatprep.subr.mxu0 0.0
      %434 = vmatpush1.xpose.msra.mxu0 0.0
      %435 = vmatprep.subr.mxu0 0.0
      %436 = vmatpush1.xpose.msra.mxu0 0.0
      %437 = vmatprep.subr.mxu0 0.0
      %438 = vmatpush1.xpose.msra.mxu0 0.0
      %439 = vmatprep.subr.mxu0 0.0
      %440 = vmatpush1.xpose.msra.mxu0 0.0
      %441 = vmatprep.subr.mxu0 0.0
      %442 = vmatpush1.xpose.msra.mxu0 0.0
      %443 = vmatprep.subr.mxu0 0.0
      %444 = vmatpush1.xpose.msra.mxu0 0.0
      %445 = vmatprep.subr.mxu0 0.0
      %446 = vmatpush1.xpose.msra.mxu0 0.0
      %447 = vmatprep.subr.mxu0 0.0
      %448 = vmatpush1.xpose.msra.mxu0 0.0
      %449 = vmatprep.subr.mxu0 0.0
      %450 = vmatpush1.xpose.msra.mxu0 0.0
      %451 = vmatprep.subr.mxu0 0.0
      %452 = vmatpush1.xpose.msra.mxu0 0.0
      %453 = vmatprep.mubr.f32.mxu0 %v316
      %454 = vmatmul.mubr.f32.gmra.mrb[0].mxu0 %v314
      %v455 = vpop.f32.mrb[0].mxu0
      %v456 = vadd.f32 0.0, %v455
      %v457 = vpop.f32.mrb[0].mxu0
      %458 = vmatprep.mubr.f32.mxu0 %v320
      %459 = vmatmul.mubr.f32.gmra.mrb[0].mxu0 %v318
      %v460 = vpop.f32.mrb[0].mxu0
      %v461 = vadd.f32 0.0, %v460
      %v462 = vpop.f32.mrb[0].mxu0
      %463 = vdwg.mxu0
      %v464 = vld [vmem:[%s3 + $0x30] sm:$0xff]
      %v465 = vld [vmem:[%s3 + $0x38] sm:$0x1]
      %v466 = vld [vmem:[%s3 + $0x40] sm:$0xff]
      %v467 = vld [vmem:[%s3 + $0x48] sm:$0xff]
      %v468 = vld [vmem:[%s3 + $0x50] sm:$0xff]
      %v469 = vld [vmem:[%s3 + $0x58] sm:$0xff]
      %v472 = vcombine.high %v456, %v456
      %v474 = vunpack.c.l.s4 1983009808
      %v475 = vunpack.c.0.s8 %v474
      %v476 = vlaneseq
      %v477 = vshrl.u32 %v476, 7
      %v478 = vsub.s32 %v475, %v477
      %v479 = vrot.slane %v456, %v478
      %v481 = vunpack.c.l.s4 1983009808
      %v482 = vunpack.c.0.s8 %v481
      %v483 = vlaneseq
      %v484 = vshrl.u32 %v483, 7
      %v485 = vsub.s32 %v482, %v484
      %v486 = vrot.slane %v472, %v485
      %v487 = vcombine.high %v479, %v479
      %v488 = vcombine.high %v486, %v486
      %v489 = vcombine.high %v461, %v461
      %v491 = vunpack.c.l.s4 1983009808
      %v492 = vunpack.c.0.s8 %v491
      %v493 = vlaneseq
      %v494 = vshrl.u32 %v493, 7
      %v495 = vsub.s32 %v492, %v494
      %v496 = vrot.slane %v461, %v495
      %v498 = vunpack.c.l.s4 1983009808
      %v499 = vunpack.c.0.s8 %v498
      %v500 = vlaneseq
      %v501 = vshrl.u32 %v500, 7
      %v502 = vsub.s32 %v499, %v501
      %v503 = vrot.slane %v489, %v502
      %v504 = vcombine.high %v496, %v496
      %v505 = vcombine.high %v503, %v503
      %vm514 = vcmask 58368
      %v515 = vsel %vm514, %v479, -inf
      %v516 = vrot.slane %v515, 4
      %v517 = vmax.f32 %v515, %v516
      %v518 = vrot.slane %v517, 2
      %v519 = vmax.f32 %v517, %v518
      %v520 = vrot.slane %v519, 1
      %v521 = vmax.f32 %v519, %v520
      %v522 = vsel %vm514, %v487, -inf
      %v523 = vrot.slane %v522, 4
      %v524 = vmax.f32 %v522, %v523
      %v525 = vrot.slane %v524, 2
      %v526 = vmax.f32 %v524, %v525
      %v527 = vrot.slane %v526, 1
      %v528 = vmax.f32 %v526, %v527
      %v529 = vsel %vm514, %v486, -inf
      %v530 = vrot.slane %v529, 4
      %v531 = vmax.f32 %v529, %v530
      %v532 = vrot.slane %v531, 2
      %v533 = vmax.f32 %v531, %v532
      %v534 = vrot.slane %v533, 1
      %v535 = vmax.f32 %v533, %v534
      %v536 = vsel %vm514, %v488, -inf
      %v537 = vrot.slane %v536, 4
      %v538 = vmax.f32 %v536, %v537
      %v539 = vrot.slane %v538, 2
      %v540 = vmax.f32 %v538, %v539
      %v541 = vrot.slane %v540, 1
      %v542 = vmax.f32 %v540, %v541
      %v543 = vsel %vm514, %v496, -inf
      %v544 = vrot.slane %v543, 4
      %v545 = vmax.f32 %v543, %v544
      %v546 = vrot.slane %v545, 2
      %v547 = vmax.f32 %v545, %v546
      %v548 = vrot.slane %v547, 1
      %v549 = vmax.f32 %v547, %v548
      %v550 = vsel %vm514, %v504, -inf
      %v551 = vrot.slane %v550, 4
      %v552 = vmax.f32 %v550, %v551
      %v553 = vrot.slane %v552, 2
      %v554 = vmax.f32 %v552, %v553
      %v555 = vrot.slane %v554, 1
      %v556 = vmax.f32 %v554, %v555
      %v557 = vsel %vm514, %v503, -inf
      %v558 = vrot.slane %v557, 4
      %v559 = vmax.f32 %v557, %v558
      %v560 = vrot.slane %v559, 2
      %v561 = vmax.f32 %v559, %v560
      %v562 = vrot.slane %v561, 1
      %v563 = vmax.f32 %v561, %v562
      %v564 = vsel %vm514, %v505, -inf
      %v565 = vrot.slane %v564, 4
      %v566 = vmax.f32 %v564, %v565
      %v567 = vrot.slane %v566, 2
      %v568 = vmax.f32 %v566, %v567
      %v569 = vrot.slane %v568, 1
      %v570 = vmax.f32 %v568, %v569
      %v571 = vlaneseq
      %v572 = vshrl.u32 %v571, 7
      %v573 = vsub.s32 0, %v572
      %v574 = vrot.slane %v465, %v573
      %vm583 = vcmask 1041409
      %v584 = vsel %vm583, %v528, %v521
      %vm585 = vcmask 1042434
      %v586 = vsel %vm585, %v535, %v584
      %vm587 = vcmask 1043459
      %v588 = vsel %vm587, %v542, %v586
      %vm589 = vcmask 1044484
      %v590 = vsel %vm589, %v549, %v588
      %vm591 = vcmask 1045509
      %v592 = vsel %vm591, %v556, %v590
      %vm593 = vcmask 1046534
      %v594 = vsel %vm593, %v563, %v592
      %vm595 = vcmask 1047559
      %v596 = vsel %vm595, %v570, %v594
      %v597 = vsel %vm265, %v596, 0
      %599 = vmatprep.subr.mxu0 0.0
      %600 = vmatpush1.msra.mxu0 %v464
      %601 = vmatprep.subr.mxu0 0.0
      %602 = vmatpush1.msra.mxu0 0.0
      %603 = vmatprep.subr.mxu0 0.0
      %604 = vmatpush1.msra.mxu0 0.0
      %605 = vmatprep.subr.mxu0 0.0
      %606 = vmatpush1.msra.mxu0 0.0
      %607 = vmatprep.subr.mxu0 0.0
      %608 = vmatpush1.msra.mxu0 0.0
      %609 = vmatprep.subr.mxu0 0.0
      %610 = vmatpush1.msra.mxu0 0.0
      %611 = vmatprep.subr.mxu0 0.0
      %612 = vmatpush1.msra.mxu0 0.0
      %613 = vmatprep.subr.mxu0 0.0
      %614 = vmatpush1.msra.mxu0 0.0
      %615 = vmatprep.subr.mxu0 0.0
      %616 = vmatpush1.msra.mxu0 0.0
      %617 = vmatprep.subr.mxu0 0.0
      %618 = vmatpush1.msra.mxu0 0.0
      %619 = vmatprep.subr.mxu0 0.0
      %620 = vmatpush1.msra.mxu0 0.0
      %621 = vmatprep.subr.mxu0 0.0
      %622 = vmatpush1.msra.mxu0 0.0
      %623 = vmatprep.subr.mxu0 0.0
      %624 = vmatpush1.msra.mxu0 0.0
      %625 = vmatprep.subr.mxu0 0.0
      %626 = vmatpush1.msra.mxu0 0.0
      %627 = vmatprep.subr.mxu0 0.0
      %628 = vmatpush1.msra.mxu0 0.0
      %629 = vmatprep.subr.mxu0 0.0
      %630 = vmatpush1.msra.mxu0 0.0
      %631 = vmatprep.subr.mxu0 0.0
      %632 = vmatpush1.msra.mxu0 0.0
      %633 = vmatprep.subr.mxu0 0.0
      %634 = vmatpush1.msra.mxu0 0.0
      %635 = vmatprep.subr.mxu0 0.0
      %636 = vmatpush1.msra.mxu0 0.0
      %637 = vmatprep.subr.mxu0 0.0
      %638 = vmatpush1.msra.mxu0 0.0
      %639 = vmatprep.subr.mxu0 0.0
      %640 = vmatpush1.msra.mxu0 0.0
      %641 = vmatprep.subr.mxu0 0.0
      %642 = vmatpush1.msra.mxu0 0.0
      %643 = vmatprep.subr.mxu0 0.0
      %644 = vmatpush1.msra.mxu0 0.0
      %645 = vmatprep.subr.mxu0 0.0
      %646 = vmatpush1.msra.mxu0 0.0
      %647 = vmatprep.subr.mxu0 0.0
      %648 = vmatpush1.msra.mxu0 0.0
      %649 = vmatprep.subr.mxu0 0.0
      %650 = vmatpush1.msra.mxu0 0.0
      %651 = vmatprep.subr.mxu0 0.0
      %652 = vmatpush1.msra.mxu0 0.0
      %653 = vmatprep.subr.mxu0 0.0
      %654 = vmatpush1.msra.mxu0 0.0
      %655 = vmatprep.subr.mxu0 0.0
      %656 = vmatpush1.msra.mxu0 0.0
      %657 = vmatprep.subr.mxu0 0.0
      %658 = vmatpush1.msra.mxu0 0.0
      %659 = vmatprep.subr.mxu0 0.0
      %660 = vmatpush1.msra.mxu0 0.0
      %661 = vmatprep.subr.mxu0 0.0
      %662 = vmatpush1.msra.mxu0 0.0
      %663 = vmatprep.mubr.f32.mxu0 0.0
      %664 = vmatmul.mubr.f32.gmra.mrb[0].mxu0 %v597
      %v665 = vpop.f32.mrb[0].mxu0
      %v666 = vadd.f32 %v574, %v665
      %v667 = vpop.f32.mrb[0].mxu0
      %668 = vdwg.mxu0
      %v670 = vadd.f32 %v666, %v596
      %vm671 = vcmp.ge.f32.partialorder %v670, 0.0
      %v672 = vmul.f32 %v670, 0.2
      %v673 = vsel %vm671, %v670, %v672
      %675 = vset.pattern.permute.xlu0 0
      %676 = vperm.xlu0 %675, %v468
      %v677 = vpop.permute.xlu0 %676
      %680 = vset.pattern.permute.xlu0 0
      %681 = vperm.xlu0 %680, %v469
      %v682 = vpop.permute.xlu0 %681
      %v685 = vsel %vm265, %v466, 0
      %v688 = vsel %vm265, %v467, 0
      %690 = vmatprep.subr.mxu0 0.0
      %691 = vmatpush1.msra.mxu0 %v673
      %692 = vmatprep.subr.mxu0 0.0
      %693 = vmatpush1.msra.mxu0 0.0
      %694 = vmatprep.subr.mxu0 0.0
      %695 = vmatpush1.msra.mxu0 0.0
      %696 = vmatprep.subr.mxu0 0.0
      %697 = vmatpush1.msra.mxu0 0.0
      %698 = vmatprep.subr.mxu0 0.0
      %699 = vmatpush1.msra.mxu0 0.0
      %700 = vmatprep.subr.mxu0 0.0
      %701 = vmatpush1.msra.mxu0 0.0
      %702 = vmatprep.subr.mxu0 0.0
      %703 = vmatpush1.msra.mxu0 0.0
      %704 = vmatprep.subr.mxu0 0.0
      %705 = vmatpush1.msra.mxu0 0.0
      %706 = vmatprep.subr.mxu0 0.0
      %707 = vmatpush1.msra.mxu0 0.0
      %708 = vmatprep.subr.mxu0 0.0
      %709 = vmatpush1.msra.mxu0 0.0
      %710 = vmatprep.subr.mxu0 0.0
      %711 = vmatpush1.msra.mxu0 0.0
      %712 = vmatprep.subr.mxu0 0.0
      %713 = vmatpush1.msra.mxu0 0.0
      %714 = vmatprep.subr.mxu0 0.0
      %715 = vmatpush1.msra.mxu0 0.0
      %716 = vmatprep.subr.mxu0 0.0
      %717 = vmatpush1.msra.mxu0 0.0
      %718 = vmatprep.subr.mxu0 0.0
      %719 = vmatpush1.msra.mxu0 0.0
      %720 = vmatprep.subr.mxu0 0.0
      %721 = vmatpush1.msra.mxu0 0.0
      %722 = vmatprep.subr.mxu0 0.0
      %723 = vmatpush1.msra.mxu0 0.0
      %724 = vmatprep.subr.mxu0 0.0
      %725 = vmatpush1.msra.mxu0 0.0
      %726 = vmatprep.subr.mxu0 0.0
      %727 = vmatpush1.msra.mxu0 0.0
      %728 = vmatprep.subr.mxu0 0.0
      %729 = vmatpush1.msra.mxu0 0.0
      %730 = vmatprep.subr.mxu0 0.0
      %731 = vmatpush1.msra.mxu0 0.0
      %732 = vmatprep.subr.mxu0 0.0
      %733 = vmatpush1.msra.mxu0 0.0
      %734 = vmatprep.subr.mxu0 0.0
      %735 = vmatpush1.msra.mxu0 0.0
      %736 = vmatprep.subr.mxu0 0.0
      %737 = vmatpush1.msra.mxu0 0.0
      %738 = vmatprep.subr.mxu0 0.0
      %739 = vmatpush1.msra.mxu0 0.0
      %740 = vmatprep.subr.mxu0 0.0
      %741 = vmatpush1.msra.mxu0 0.0
      %742 = vmatprep.subr.mxu0 0.0
      %743 = vmatpush1.msra.mxu0 0.0
      %744 = vmatprep.subr.mxu0 0.0
      %745 = vmatpush1.msra.mxu0 0.0
      %746 = vmatprep.subr.mxu0 0.0
      %747 = vmatpush1.msra.mxu0 0.0
      %748 = vmatprep.subr.mxu0 0.0
      %749 = vmatpush1.msra.mxu0 0.0
      %750 = vmatprep.subr.mxu0 0.0
      %751 = vmatpush1.msra.mxu0 0.0
      %752 = vmatprep.subr.mxu0 0.0
      %753 = vmatpush1.msra.mxu0 0.0
      %754 = vmatprep.mubr.f32.mxu0 0.0
      %755 = vmatmul.mubr.f32.gmra.mrb[0].mxu0 %v685
      %v756 = vpop.f32.mrb[0].mxu0
      %v757 = vadd.f32 %v677, %v756
      %v758 = vpop.f32.mrb[0].mxu0
      %759 = vmatprep.mubr.f32.mxu0 0.0
      %760 = vmatmul.mubr.f32.gmra.mrb[0].mxu0 %v688
      %v761 = vpop.f32.mrb[0].mxu0
      %v762 = vadd.f32 %v682, %v761
      %v763 = vpop.f32.mrb[0].mxu0
      %764 = vdwg.mxu0
      %v765 = vld [vmem:[%s3 + $0x60] sm:$0xff]
      %v766 = vld [vmem:[%s3 + $0x68] sm:$0x1]
      %v767 = vld [vmem:[%s3 + $0x70] sm:$0xff]
      %v768 = vld [vmem:[%s3 + $0x78] sm:$0xff]
      %v769 = vld [vmem:[%s3 + $0x80] sm:$0xff]
      %v770 = vld [vmem:[%s3 + $0x88] sm:$0xff]
      %vm773 = vcmask 60416
      %v774 = vsel %vm773, %v456, -inf
      %v775 = vrot.slane %v774, 4
      %v776 = vmax.f32 %v774, %v775
      %v777 = vrot.slane %v776, 2
      %v778 = vmax.f32 %v776, %v777
      %v779 = vrot.slane %v778, 1
      %v780 = vmax.f32 %v778, %v779
      %v781 = vsel %vm773, %v472, -inf
      %v782 = vrot.slane %v781, 4
      %v783 = vmax.f32 %v781, %v782
      %v784 = vrot.slane %v783, 2
      %v785 = vmax.f32 %v783, %v784
      %v786 = vrot.slane %v785, 1
      %v787 = vmax.f32 %v785, %v786
      %v788 = vsel %vm773, %v461, -inf
      %v789 = vrot.slane %v788, 4
      %v790 = vmax.f32 %v788, %v789
      %v791 = vrot.slane %v790, 2
      %v792 = vmax.f32 %v790, %v791
      %v793 = vrot.slane %v792, 1
      %v794 = vmax.f32 %v792, %v793
      %v795 = vsel %vm773, %v489, -inf
      %v796 = vrot.slane %v795, 4
      %v797 = vmax.f32 %v795, %v796
      %v798 = vrot.slane %v797, 2
      %v799 = vmax.f32 %v797, %v798
      %v800 = vrot.slane %v799, 1
      %v801 = vmax.f32 %v799, %v800
      %v802 = vlaneseq
      %v803 = vshrl.u32 %v802, 7
      %v804 = vsub.s32 0, %v803
      %v805 = vrot.slane %v766, %v804
      %v810 = vsel %vm583, %v787, %v780
      %v811 = vsel %vm585, %v794, %v810
      %v812 = vsel %vm587, %v801, %v811
      %v813 = vsel %vm265, %v812, 0
      %815 = vmatprep.subr.mxu0 0.0
      %816 = vmatpush1.msra.mxu0 %v765
      %817 = vmatprep.subr.mxu0 0.0
      %818 = vmatpush1.msra.mxu0 0.0
      %819 = vmatprep.subr.mxu0 0.0
      %820 = vmatpush1.msra.mxu0 0.0
      %821 = vmatprep.subr.mxu0 0.0
      %822 = vmatpush1.msra.mxu0 0.0
      %823 = vmatprep.subr.mxu0 0.0
      %824 = vmatpush1.msra.mxu0 0.0
      %825 = vmatprep.subr.mxu0 0.0
      %826 = vmatpush1.msra.mxu0 0.0
      %827 = vmatprep.subr.mxu0 0.0
      %828 = vmatpush1.msra.mxu0 0.0
      %829 = vmatprep.subr.mxu0 0.0
      %830 = vmatpush1.msra.mxu0 0.0
      %831 = vmatprep.subr.mxu0 0.0
      %832 = vmatpush1.msra.mxu0 0.0
      %833 = vmatprep.subr.mxu0 0.0
      %834 = vmatpush1.msra.mxu0 0.0
      %835 = vmatprep.subr.mxu0 0.0
      %836 = vmatpush1.msra.mxu0 0.0
      %837 = vmatprep.subr.mxu0 0.0
      %838 = vmatpush1.msra.mxu0 0.0
      %839 = vmatprep.subr.mxu0 0.0
      %840 = vmatpush1.msra.mxu0 0.0
      %841 = vmatprep.subr.mxu0 0.0
      %842 = vmatpush1.msra.mxu0 0.0
      %843 = vmatprep.subr.mxu0 0.0
      %844 = vmatpush1.msra.mxu0 0.0
      %845 = vmatprep.subr.mxu0 0.0
      %846 = vmatpush1.msra.mxu0 0.0
      %847 = vmatprep.subr.mxu0 0.0
      %848 = vmatpush1.msra.mxu0 0.0
      %849 = vmatprep.subr.mxu0 0.0
      %850 = vmatpush1.msra.mxu0 0.0
      %851 = vmatprep.subr.mxu0 0.0
      %852 = vmatpush1.msra.mxu0 0.0
      %853 = vmatprep.subr.mxu0 0.0
      %854 = vmatpush1.msra.mxu0 0.0
      %855 = vmatprep.subr.mxu0 0.0
      %856 = vmatpush1.msra.mxu0 0.0
      %857 = vmatprep.subr.mxu0 0.0
      %858 = vmatpush1.msra.mxu0 0.0
      %859 = vmatprep.subr.mxu0 0.0
      %860 = vmatpush1.msra.mxu0 0.0
      %861 = vmatprep.subr.mxu0 0.0
      %862 = vmatpush1.msra.mxu0 0.0
      %863 = vmatprep.subr.mxu0 0.0
      %864 = vmatpush1.msra.mxu0 0.0
      %865 = vmatprep.subr.mxu0 0.0
      %866 = vmatpush1.msra.mxu0 0.0
      %867 = vmatprep.subr.mxu0 0.0
      %868 = vmatpush1.msra.mxu0 0.0
      %869 = vmatprep.subr.mxu0 0.0
      %870 = vmatpush1.msra.mxu0 0.0
      %871 = vmatprep.subr.mxu0 0.0
      %872 = vmatpush1.msra.mxu0 0.0
      %873 = vmatprep.subr.mxu0 0.0
      %874 = vmatpush1.msra.mxu0 0.0
      %875 = vmatprep.subr.mxu0 0.0
      %876 = vmatpush1.msra.mxu0 0.0
      %877 = vmatprep.subr.mxu0 0.0
      %878 = vmatpush1.msra.mxu0 0.0
      %879 = vmatprep.mubr.f32.mxu0 0.0
      %880 = vmatmul.mubr.f32.gmra.mrb[0].mxu0 %v813
      %v881 = vpop.f32.mrb[0].mxu0
      %v882 = vadd.f32 %v805, %v881
      %v883 = vpop.f32.mrb[0].mxu0
      %884 = vdwg.mxu0
      %v886 = vadd.f32 %v882, %v812
      %vm887 = vcmp.ge.f32.partialorder %v886, 0.0
      %v888 = vmul.f32 %v886, 0.2
      %v889 = vsel %vm887, %v886, %v888
      %891 = vset.pattern.permute.xlu0 0
      %892 = vperm.xlu0 %891, %v769
      %v893 = vpop.permute.xlu0 %892
      %896 = vset.pattern.permute.xlu0 0
      %897 = vperm.xlu0 %896, %v770
      %v898 = vpop.permute.xlu0 %897
      %vm900 = vcmask 31744
      %v902 = vsel %vm900, %v767, 0
      %v905 = vsel %vm900, %v768, 0
      %v908 = vsel %vm272, %v889, 0
      %910 = vmatprep.subr.mxu0 0.0
      %911 = vmatpush1.msra.mxu0 %v908
      %912 = vmatprep.subr.mxu0 0.0
      %913 = vmatpush1.msra.mxu0 0.0
      %914 = vmatprep.subr.mxu0 0.0
      %915 = vmatpush1.msra.mxu0 0.0
      %916 = vmatprep.subr.mxu0 0.0
      %917 = vmatpush1.msra.mxu0 0.0
      %918 = vmatprep.subr.mxu0 0.0
      %919 = vmatpush1.msra.mxu0 0.0
      %920 = vmatprep.subr.mxu0 0.0
      %921 = vmatpush1.msra.mxu0 0.0
      %922 = vmatprep.subr.mxu0 0.0
      %923 = vmatpush1.msra.mxu0 0.0
      %924 = vmatprep.subr.mxu0 0.0
      %925 = vmatpush1.msra.mxu0 0.0
      %926 = vmatprep.subr.mxu0 0.0
      %927 = vmatpush1.msra.mxu0 0.0
      %928 = vmatprep.subr.mxu0 0.0
      %929 = vmatpush1.msra.mxu0 0.0
      %930 = vmatprep.subr.mxu0 0.0
      %931 = vmatpush1.msra.mxu0 0.0
      %932 = vmatprep.subr.mxu0 0.0
      %933 = vmatpush1.msra.mxu0 0.0
      %934 = vmatprep.subr.mxu0 0.0
      %935 = vmatpush1.msra.mxu0 0.0
      %936 = vmatprep.subr.mxu0 0.0
      %937 = vmatpush1.msra.mxu0 0.0
      %938 = vmatprep.subr.mxu0 0.0
      %939 = vmatpush1.msra.mxu0 0.0
      %940 = vmatprep.subr.mxu0 0.0
      %941 = vmatpush1.msra.mxu0 0.0
      %942 = vmatprep.subr.mxu0 0.0
      %943 = vmatpush1.msra.mxu0 0.0
      %944 = vmatprep.subr.mxu0 0.0
      %945 = vmatpush1.msra.mxu0 0.0
      %946 = vmatprep.subr.mxu0 0.0
      %947 = vmatpush1.msra.mxu0 0.0
      %948 = vmatprep.subr.mxu0 0.0
      %949 = vmatpush1.msra.mxu0 0.0
      %950 = vmatprep.subr.mxu0 0.0
      %951 = vmatpush1.msra.mxu0 0.0
      %952 = vmatprep.subr.mxu0 0.0
      %953 = vmatpush1.msra.mxu0 0.0
      %954 = vmatprep.subr.mxu0 0.0
      %955 = vmatpush1.msra.mxu0 0.0
      %956 = vmatprep.subr.mxu0 0.0
      %957 = vmatpush1.msra.mxu0 0.0
      %958 = vmatprep.subr.mxu0 0.0
      %959 = vmatpush1.msra.mxu0 0.0
      %960 = vmatprep.subr.mxu0 0.0
      %961 = vmatpush1.msra.mxu0 0.0
      %962 = vmatprep.subr.mxu0 0.0
      %963 = vmatpush1.msra.mxu0 0.0
      %964 = vmatprep.subr.mxu0 0.0
      %965 = vmatpush1.msra.mxu0 0.0
      %966 = vmatprep.subr.mxu0 0.0
      %967 = vmatpush1.msra.mxu0 0.0
      %968 = vmatprep.subr.mxu0 0.0
      %969 = vmatpush1.msra.mxu0 0.0
      %970 = vmatprep.subr.mxu0 0.0
      %971 = vmatpush1.msra.mxu0 0.0
      %972 = vmatprep.subr.mxu0 0.0
      %973 = vmatpush1.msra.mxu0 0.0
      %974 = vmatprep.mubr.f32.mxu0 0.0
      %975 = vmatmul.mubr.f32.gmra.mrb[0].mxu0 %v902
      %v976 = vpop.f32.mrb[0].mxu0
      %v977 = vadd.f32 %v893, %v976
      %v978 = vpop.f32.mrb[0].mxu0
      %979 = vmatprep.mubr.f32.mxu0 0.0
      %980 = vmatmul.mubr.f32.gmra.mrb[0].mxu0 %v905
      %v981 = vpop.f32.mrb[0].mxu0
      %v982 = vadd.f32 %v898, %v981
      %v983 = vpop.f32.mrb[0].mxu0
      %984 = vdwg.mxu0
      %v985 = vadd.f32 %v757, %v977
      %v986 = vadd.f32 %v762, %v982
      %v987 = vld [vmem:[%s3 + $0x90] sm:$0xff]
      %v988 = vld [vmem:[%s3 + $0x98] sm:$0x1]
      %v989 = vld [vmem:[%s3 + $0xa0] sm:$0xff]
      %v990 = vld [vmem:[%s3 + $0xa8] sm:$0xff]
      %v991 = vld [vmem:[%s3 + $0xb0] sm:$0xff]
      %v992 = vld [vmem:[%s3 + $0xb8] sm:$0xff]
      %v993 = vsel %vm265, %v456, -inf
      %v994 = vrot.slane %v993, 4
      %v995 = vmax.f32 %v993, %v994
      %v996 = vrot.slane %v995, 2
      %v997 = vmax.f32 %v995, %v996
      %v998 = vrot.slane %v997, 1
      %v999 = vmax.f32 %v997, %v998
      %v1000 = vsel %vm265, %v461, -inf
      %v1001 = vrot.slane %v1000, 4
      %v1002 = vmax.f32 %v1000, %v1001
      %v1003 = vrot.slane %v1002, 2
      %v1004 = vmax.f32 %v1002, %v1003
      %v1005 = vrot.slane %v1004, 1
      %v1006 = vmax.f32 %v1004, %v1005
      %v1007 = vlaneseq
      %v1008 = vshrl.u32 %v1007, 7
      %v1009 = vsub.s32 0, %v1008
      %v1010 = vrot.slane %v988, %v1009
      %v1013 = vsel %vm583, %v1006, %v999
      %v1014 = vsel %vm265, %v1013, 0
      %1016 = vmatprep.subr.mxu0 0.0
      %1017 = vmatpush1.msra.mxu0 %v987
      %1018 = vmatprep.subr.mxu0 0.0
      %1019 = vmatpush1.msra.mxu0 0.0
      %1020 = vmatprep.subr.mxu0 0.0
      %1021 = vmatpush1.msra.mxu0 0.0
      %1022 = vmatprep.subr.mxu0 0.0
      %1023 = vmatpush1.msra.mxu0 0.0
      %1024 = vmatprep.subr.mxu0 0.0
      %1025 = vmatpush1.msra.mxu0 0.0
      %1026 = vmatprep.subr.mxu0 0.0
      %1027 = vmatpush1.msra.mxu0 0.0
      %1028 = vmatprep.subr.mxu0 0.0
      %1029 = vmatpush1.msra.mxu0 0.0
      %1030 = vmatprep.subr.mxu0 0.0
      %1031 = vmatpush1.msra.mxu0 0.0
      %1032 = vmatprep.subr.mxu0 0.0
      %1033 = vmatpush1.msra.mxu0 0.0
      %1034 = vmatprep.subr.mxu0 0.0
      %1035 = vmatpush1.msra.mxu0 0.0
      %1036 = vmatprep.subr.mxu0 0.0
      %1037 = vmatpush1.msra.mxu0 0.0
      %1038 = vmatprep.subr.mxu0 0.0
      %1039 = vmatpush1.msra.mxu0 0.0
      %1040 = vmatprep.subr.mxu0 0.0
      %1041 = vmatpush1.msra.mxu0 0.0
      %1042 = vmatprep.subr.mxu0 0.0
      %1043 = vmatpush1.msra.mxu0 0.0
      %1044 = vmatprep.subr.mxu0 0.0
      %1045 = vmatpush1.msra.mxu0 0.0
      %1046 = vmatprep.subr.mxu0 0.0
      %1047 = vmatpush1.msra.mxu0 0.0
      %1048 = vmatprep.subr.mxu0 0.0
      %1049 = vmatpush1.msra.mxu0 0.0
      %1050 = vmatprep.subr.mxu0 0.0
      %1051 = vmatpush1.msra.mxu0 0.0
      %1052 = vmatprep.subr.mxu0 0.0
      %1053 = vmatpush1.msra.mxu0 0.0
      %1054 = vmatprep.subr.mxu0 0.0
      %1055 = vmatpush1.msra.mxu0 0.0
      %1056 = vmatprep.subr.mxu0 0.0
      %1057 = vmatpush1.msra.mxu0 0.0
      %1058 = vmatprep.subr.mxu0 0.0
      %1059 = vmatpush1.msra.mxu0 0.0
      %1060 = vmatprep.subr.mxu0 0.0
      %1061 = vmatpush1.msra.mxu0 0.0
      %1062 = vmatprep.subr.mxu0 0.0
      %1063 = vmatpush1.msra.mxu0 0.0
      %1064 = vmatprep.subr.mxu0 0.0
      %1065 = vmatpush1.msra.mxu0 0.0
      %1066 = vmatprep.subr.mxu0 0.0
      %1067 = vmatpush1.msra.mxu0 0.0
      %1068 = vmatprep.subr.mxu0 0.0
      %1069 = vmatpush1.msra.mxu0 0.0
      %1070 = vmatprep.subr.mxu0 0.0
      %1071 = vmatpush1.msra.mxu0 0.0
      %1072 = vmatprep.subr.mxu0 0.0
      %1073 = vmatpush1.msra.mxu0 0.0
      %1074 = vmatprep.subr.mxu0 0.0
      %1075 = vmatpush1.msra.mxu0 0.0
      %1076 = vmatprep.subr.mxu0 0.0
      %1077 = vmatpush1.msra.mxu0 0.0
      %1078 = vmatprep.subr.mxu0 0.0
      %1079 = vmatpush1.msra.mxu0 0.0
      %1080 = vmatprep.mubr.f32.mxu0 0.0
      %1081 = vmatmul.mubr.f32.gmra.mrb[0].mxu0 %v1014
      %v1082 = vpop.f32.mrb[0].mxu0
      %v1083 = vadd.f32 %v1010, %v1082
      %v1084 = vpop.f32.mrb[0].mxu0
      %1085 = vdwg.mxu0
      %v1087 = vadd.f32 %v1083, %v1013
      %vm1088 = vcmp.ge.f32.partialorder %v1087, 0.0
      %v1089 = vmul.f32 %v1087, 0.2
      %v1090 = vsel %vm1088, %v1087, %v1089
      %1092 = vset.pattern.permute.xlu0 0
      %1093 = vperm.xlu0 %1092, %v991
      %v1094 = vpop.permute.xlu0 %1093
      %1097 = vset.pattern.permute.xlu0 0
      %1098 = vperm.xlu0 %1097, %v992
      %v1099 = vpop.permute.xlu0 %1098
      %vm1101 = vcmask 15360
      %v1103 = vsel %vm1101, %v989, 0
      %v1106 = vsel %vm1101, %v990, 0
      %vm1108 = vcmask 1041408
      %v1110 = vsel %vm1108, %v1090, 0
      %1112 = vmatprep.subr.mxu0 0.0
      %1113 = vmatpush1.msra.mxu0 %v1110
      %1114 = vmatprep.subr.mxu0 0.0
      %1115 = vmatpush1.msra.mxu0 0.0
      %1116 = vmatprep.subr.mxu0 0.0
      %1117 = vmatpush1.msra.mxu0 0.0
      %1118 = vmatprep.subr.mxu0 0.0
      %1119 = vmatpush1.msra.mxu0 0.0
      %1120 = vmatprep.subr.mxu0 0.0
      %1121 = vmatpush1.msra.mxu0 0.0
      %1122 = vmatprep.subr.mxu0 0.0
      %1123 = vmatpush1.msra.mxu0 0.0
      %1124 = vmatprep.subr.mxu0 0.0
      %1125 = vmatpush1.msra.mxu0 0.0
      %1126 = vmatprep.subr.mxu0 0.0
      %1127 = vmatpush1.msra.mxu0 0.0
      %1128 = vmatprep.subr.mxu0 0.0
      %1129 = vmatpush1.msra.mxu0 0.0
      %1130 = vmatprep.subr.mxu0 0.0
      %1131 = vmatpush1.msra.mxu0 0.0
      %1132 = vmatprep.subr.mxu0 0.0
      %1133 = vmatpush1.msra.mxu0 0.0
      %1134 = vmatprep.subr.mxu0 0.0
      %1135 = vmatpush1.msra.mxu0 0.0
      %1136 = vmatprep.subr.mxu0 0.0
      %1137 = vmatpush1.msra.mxu0 0.0
      %1138 = vmatprep.subr.mxu0 0.0
      %1139 = vmatpush1.msra.mxu0 0.0
      %1140 = vmatprep.subr.mxu0 0.0
      %1141 = vmatpush1.msra.mxu0 0.0
      %1142 = vmatprep.subr.mxu0 0.0
      %1143 = vmatpush1.msra.mxu0 0.0
      %1144 = vmatprep.subr.mxu0 0.0
      %1145 = vmatpush1.msra.mxu0 0.0
      %1146 = vmatprep.subr.mxu0 0.0
      %1147 = vmatpush1.msra.mxu0 0.0
      %1148 = vmatprep.subr.mxu0 0.0
      %1149 = vmatpush1.msra.mxu0 0.0
      %1150 = vmatprep.subr.mxu0 0.0
      %1151 = vmatpush1.msra.mxu0 0.0
      %1152 = vmatprep.subr.mxu0 0.0
      %1153 = vmatpush1.msra.mxu0 0.0
      %1154 = vmatprep.subr.mxu0 0.0
      %1155 = vmatpush1.msra.mxu0 0.0
      %1156 = vmatprep.subr.mxu0 0.0
      %1157 = vmatpush1.msra.mxu0 0.0
      %1158 = vmatprep.subr.mxu0 0.0
      %1159 = vmatpush1.msra.mxu0 0.0
      %1160 = vmatprep.subr.mxu0 0.0
      %1161 = vmatpush1.msra.mxu0 0.0
      %1162 = vmatprep.subr.mxu0 0.0
      %1163 = vmatpush1.msra.mxu0 0.0
      %1164 = vmatprep.subr.mxu0 0.0
      %1165 = vmatpush1.msra.mxu0 0.0
      %1166 = vmatprep.subr.mxu0 0.0
      %1167 = vmatpush1.msra.mxu0 0.0
      %1168 = vmatprep.subr.mxu0 0.0
      %1169 = vmatpush1.msra.mxu0 0.0
      %1170 = vmatprep.subr.mxu0 0.0
      %1171 = vmatpush1.msra.mxu0 0.0
      %1172 = vmatprep.subr.mxu0 0.0
      %1173 = vmatpush1.msra.mxu0 0.0
      %1174 = vmatprep.subr.mxu0 0.0
      %1175 = vmatpush1.msra.mxu0 0.0
      %1176 = vmatprep.mubr.f32.mxu0 0.0
      %1177 = vmatmul.mubr.f32.gmra.mrb[0].mxu0 %v1103
      %v1178 = vpop.f32.mrb[0].mxu0
      %v1179 = vadd.f32 %v1094, %v1178
      %v1180 = vpop.f32.mrb[0].mxu0
      %1181 = vmatprep.mubr.f32.mxu0 0.0
      %1182 = vmatmul.mubr.f32.gmra.mrb[0].mxu0 %v1106
      %v1183 = vpop.f32.mrb[0].mxu0
      %v1184 = vadd.f32 %v1099, %v1183
      %v1185 = vpop.f32.mrb[0].mxu0
      %1186 = vdwg.mxu0
      %v1187 = vadd.f32 %v985, %v1179
      %v1188 = vadd.f32 %v986, %v1184
      %v1189 = vld [vmem:[%s3 + $0xc0] sm:$0xff]
      %v1190 = vld [vmem:[%s3 + $0xc8] sm:$0x1]
      %v1191 = vld [vmem:[%s3 + $0xd0] sm:$0xff]
      %v1192 = vld [vmem:[%s3 + $0xd8] sm:$0xff]
      %v1193 = vld [vmem:[%s3 + $0xe0] sm:$0xff]
      %v1194 = vld [vmem:[%s3 + $0xe8] sm:$0xff]
      %v1197 = vcombine.high %v1187, %v1187
      %v1199 = vunpack.c.l.s4 1983009808
      %v1200 = vunpack.c.0.s8 %v1199
      %v1201 = vlaneseq
      %v1202 = vshrl.u32 %v1201, 7
      %v1203 = vsub.s32 %v1200, %v1202
      %v1204 = vrot.slane %v1187, %v1203
      %v1206 = vunpack.c.l.s4 1983009808
      %v1207 = vunpack.c.0.s8 %v1206
      %v1208 = vlaneseq
      %v1209 = vshrl.u32 %v1208, 7
      %v1210 = vsub.s32 %v1207, %v1209
      %v1211 = vrot.slane %v1197, %v1210
      %v1212 = vcombine.high %v1204, %v1204
      %v1213 = vcombine.high %v1211, %v1211
      %v1214 = vcombine.high %v1188, %v1188
      %v1216 = vunpack.c.l.s4 1983009808
      %v1217 = vunpack.c.0.s8 %v1216
      %v1218 = vlaneseq
      %v1219 = vshrl.u32 %v1218, 7
      %v1220 = vsub.s32 %v1217, %v1219
      %v1221 = vrot.slane %v1188, %v1220
      %v1223 = vunpack.c.l.s4 1983009808
      %v1224 = vunpack.c.0.s8 %v1223
      %v1225 = vlaneseq
      %v1226 = vshrl.u32 %v1225, 7
      %v1227 = vsub.s32 %v1224, %v1226
      %v1228 = vrot.slane %v1214, %v1227
      %v1229 = vcombine.high %v1221, %v1221
      %v1230 = vcombine.high %v1228, %v1228
      %v1239 = vsel %vm514, %v1204, -inf
      %v1240 = vrot.slane %v1239, 4
      %v1241 = vmax.f32 %v1239, %v1240
      %v1242 = vrot.slane %v1241, 2
      %v1243 = vmax.f32 %v1241, %v1242
      %v1244 = vrot.slane %v1243, 1
      %v1245 = vmax.f32 %v1243, %v1244
      %v1246 = vsel %vm514, %v1212, -inf
      %v1247 = vrot.slane %v1246, 4
      %v1248 = vmax.f32 %v1246, %v1247
      %v1249 = vrot.slane %v1248, 2
      %v1250 = vmax.f32 %v1248, %v1249
      %v1251 = vrot.slane %v1250, 1
      %v1252 = vmax.f32 %v1250, %v1251
      %v1253 = vsel %vm514, %v1211, -inf
      %v1254 = vrot.slane %v1253, 4
      %v1255 = vmax.f32 %v1253, %v1254
      %v1256 = vrot.slane %v1255, 2
      %v1257 = vmax.f32 %v1255, %v1256
      %v1258 = vrot.slane %v1257, 1
      %v1259 = vmax.f32 %v1257, %v1258
      %v1260 = vsel %vm514, %v1213, -inf
      %v1261 = vrot.slane %v1260, 4
      %v1262 = vmax.f32 %v1260, %v1261
      %v1263 = vrot.slane %v1262, 2
      %v1264 = vmax.f32 %v1262, %v1263
      %v1265 = vrot.slane %v1264, 1
      %v1266 = vmax.f32 %v1264, %v1265
      %v1267 = vsel %vm514, %v1221, -inf
      %v1268 = vrot.slane %v1267, 4
      %v1269 = vmax.f32 %v1267, %v1268
      %v1270 = vrot.slane %v1269, 2
      %v1271 = vmax.f32 %v1269, %v1270
      %v1272 = vrot.slane %v1271, 1
      %v1273 = vmax.f32 %v1271, %v1272
      %v1274 = vsel %vm514, %v1229, -inf
      %v1275 = vrot.slane %v1274, 4
      %v1276 = vmax.f32 %v1274, %v1275
      %v1277 = vrot.slane %v1276, 2
      %v1278 = vmax.f32 %v1276, %v1277
      %v1279 = vrot.slane %v1278, 1
      %v1280 = vmax.f32 %v1278, %v1279
      %v1281 = vsel %vm514, %v1228, -inf
      %v1282 = vrot.slane %v1281, 4
      %v1283 = vmax.f32 %v1281, %v1282
      %v1284 = vrot.slane %v1283, 2
      %v1285 = vmax.f32 %v1283, %v1284
      %v1286 = vrot.slane %v1285, 1
      %v1287 = vmax.f32 %v1285, %v1286
      %v1288 = vsel %vm514, %v1230, -inf
      %v1289 = vrot.slane %v1288, 4
      %v1290 = vmax.f32 %v1288, %v1289
      %v1291 = vrot.slane %v1290, 2
      %v1292 = vmax.f32 %v1290, %v1291
      %v1293 = vrot.slane %v1292, 1
      %v1294 = vmax.f32 %v1292, %v1293
      %v1295 = vlaneseq
      %v1296 = vshrl.u32 %v1295, 7
      %v1297 = vsub.s32 0, %v1296
      %v1298 = vrot.slane %v1190, %v1297
      %v1307 = vsel %vm583, %v1252, %v1245
      %v1308 = vsel %vm585, %v1259, %v1307
      %v1309 = vsel %vm587, %v1266, %v1308
      %v1310 = vsel %vm589, %v1273, %v1309
      %v1311 = vsel %vm591, %v1280, %v1310
      %v1312 = vsel %vm593, %v1287, %v1311
      %v1313 = vsel %vm595, %v1294, %v1312
      %v1314 = vsel %vm265, %v1313, 0
      %1316 = vmatprep.subr.mxu0 0.0
      %1317 = vmatpush1.msra.mxu0 %v1189
      %1318 = vmatprep.subr.mxu0 0.0
      %1319 = vmatpush1.msra.mxu0 0.0
      %1320 = vmatprep.subr.mxu0 0.0
      %1321 = vmatpush1.msra.mxu0 0.0
      %1322 = vmatprep.subr.mxu0 0.0
      %1323 = vmatpush1.msra.mxu0 0.0
      %1324 = vmatprep.subr.mxu0 0.0
      %1325 = vmatpush1.msra.mxu0 0.0
      %1326 = vmatprep.subr.mxu0 0.0
      %1327 = vmatpush1.msra.mxu0 0.0
      %1328 = vmatprep.subr.mxu0 0.0
      %1329 = vmatpush1.msra.mxu0 0.0
      %1330 = vmatprep.subr.mxu0 0.0
      %1331 = vmatpush1.msra.mxu0 0.0
      %1332 = vmatprep.subr.mxu0 0.0
      %1333 = vmatpush1.msra.mxu0 0.0
      %1334 = vmatprep.subr.mxu0 0.0
      %1335 = vmatpush1.msra.mxu0 0.0
      %1336 = vmatprep.subr.mxu0 0.0
      %1337 = vmatpush1.msra.mxu0 0.0
      %1338 = vmatprep.subr.mxu0 0.0
      %1339 = vmatpush1.msra.mxu0 0.0
      %1340 = vmatprep.subr.mxu0 0.0
      %1341 = vmatpush1.msra.mxu0 0.0
      %1342 = vmatprep.subr.mxu0 0.0
      %1343 = vmatpush1.msra.mxu0 0.0
      %1344 = vmatprep.subr.mxu0 0.0
      %1345 = vmatpush1.msra.mxu0 0.0
      %1346 = vmatprep.subr.mxu0 0.0
      %1347 = vmatpush1.msra.mxu0 0.0
      %1348 = vmatprep.subr.mxu0 0.0
      %1349 = vmatpush1.msra.mxu0 0.0
      %1350 = vmatprep.subr.mxu0 0.0
      %1351 = vmatpush1.msra.mxu0 0.0
      %1352 = vmatprep.subr.mxu0 0.0
      %1353 = vmatpush1.msra.mxu0 0.0
      %1354 = vmatprep.subr.mxu0 0.0
      %1355 = vmatpush1.msra.mxu0 0.0
      %1356 = vmatprep.subr.mxu0 0.0
      %1357 = vmatpush1.msra.mxu0 0.0
      %1358 = vmatprep.subr.mxu0 0.0
      %1359 = vmatpush1.msra.mxu0 0.0
      %1360 = vmatprep.subr.mxu0 0.0
      %1361 = vmatpush1.msra.mxu0 0.0
      %1362 = vmatprep.subr.mxu0 0.0
      %1363 = vmatpush1.msra.mxu0 0.0
      %1364 = vmatprep.subr.mxu0 0.0
      %1365 = vmatpush1.msra.mxu0 0.0
      %1366 = vmatprep.subr.mxu0 0.0
      %1367 = vmatpush1.msra.mxu0 0.0
      %1368 = vmatprep.subr.mxu0 0.0
      %1369 = vmatpush1.msra.mxu0 0.0
      %1370 = vmatprep.subr.mxu0 0.0
      %1371 = vmatpush1.msra.mxu0 0.0
      %1372 = vmatprep.subr.mxu0 0.0
      %1373 = vmatpush1.msra.mxu0 0.0
      %1374 = vmatprep.subr.mxu0 0.0
      %1375 = vmatpush1.msra.mxu0 0.0
      %1376 = vmatprep.subr.mxu0 0.0
      %1377 = vmatpush1.msra.mxu0 0.0
      %1378 = vmatprep.subr.mxu0 0.0
      %1379 = vmatpush1.msra.mxu0 0.0
      %1380 = vmatprep.mubr.f32.mxu0 0.0
      %1381 = vmatmul.mubr.f32.gmra.mrb[0].mxu0 %v1314
      %v1382 = vpop.f32.mrb[0].mxu0
      %v1383 = vadd.f32 %v1298, %v1382
      %v1384 = vpop.f32.mrb[0].mxu0
      %1385 = vdwg.mxu0
      %v1387 = vadd.f32 %v1383, %v1313
      %vm1388 = vcmp.ge.f32.partialorder %v1387, 0.0
      %v1389 = vmul.f32 %v1387, 0.2
      %v1390 = vsel %vm1388, %v1387, %v1389
      %1392 = vset.pattern.permute.xlu0 0
      %1393 = vperm.xlu0 %1392, %v1193
      %v1394 = vpop.permute.xlu0 %1393
      %1397 = vset.pattern.permute.xlu0 0
      %1398 = vperm.xlu0 %1397, %v1194
      %v1399 = vpop.permute.xlu0 %1398
      %v1402 = vsel %vm265, %v1191, 0
      %v1405 = vsel %vm265, %v1192, 0
      %1407 = vmatprep.subr.mxu0 0.0
      %1408 = vmatpush1.msra.mxu0 %v1390
      %1409 = vmatprep.subr.mxu0 0.0
      %1410 = vmatpush1.msra.mxu0 0.0
      %1411 = vmatprep.subr.mxu0 0.0
      %1412 = vmatpush1.msra.mxu0 0.0
      %1413 = vmatprep.subr.mxu0 0.0
      %1414 = vmatpush1.msra.mxu0 0.0
      %1415 = vmatprep.subr.mxu0 0.0
      %1416 = vmatpush1.msra.mxu0 0.0
      %1417 = vmatprep.subr.mxu0 0.0
      %1418 = vmatpush1.msra.mxu0 0.0
      %1419 = vmatprep.subr.mxu0 0.0
      %1420 = vmatpush1.msra.mxu0 0.0
      %1421 = vmatprep.subr.mxu0 0.0
      %1422 = vmatpush1.msra.mxu0 0.0
      %1423 = vmatprep.subr.mxu0 0.0
      %1424 = vmatpush1.msra.mxu0 0.0
      %1425 = vmatprep.subr.mxu0 0.0
      %1426 = vmatpush1.msra.mxu0 0.0
      %1427 = vmatprep.subr.mxu0 0.0
      %1428 = vmatpush1.msra.mxu0 0.0
      %1429 = vmatprep.subr.mxu0 0.0
      %1430 = vmatpush1.msra.mxu0 0.0
      %1431 = vmatprep.subr.mxu0 0.0
      %1432 = vmatpush1.msra.mxu0 0.0
      %1433 = vmatprep.subr.mxu0 0.0
      %1434 = vmatpush1.msra.mxu0 0.0
      %1435 = vmatprep.subr.mxu0 0.0
      %1436 = vmatpush1.msra.mxu0 0.0
      %1437 = vmatprep.subr.mxu0 0.0
      %1438 = vmatpush1.msra.mxu0 0.0
      %1439 = vmatprep.subr.mxu0 0.0
      %1440 = vmatpush1.msra.mxu0 0.0
      %1441 = vmatprep.subr.mxu0 0.0
      %1442 = vmatpush1.msra.mxu0 0.0
      %1443 = vmatprep.subr.mxu0 0.0
      %1444 = vmatpush1.msra.mxu0 0.0
      %1445 = vmatprep.subr.mxu0 0.0
      %1446 = vmatpush1.msra.mxu0 0.0
      %1447 = vmatprep.subr.mxu0 0.0
      %1448 = vmatpush1.msra.mxu0 0.0
      %1449 = vmatprep.subr.mxu0 0.0
      %1450 = vmatpush1.msra.mxu0 0.0
      %1451 = vmatprep.subr.mxu0 0.0
      %1452 = vmatpush1.msra.mxu0 0.0
      %1453 = vmatprep.subr.mxu0 0.0
      %1454 = vmatpush1.msra.mxu0 0.0
      %1455 = vmatprep.subr.mxu0 0.0
      %1456 = vmatpush1.msra.mxu0 0.0
      %1457 = vmatprep.subr.mxu0 0.0
      %1458 = vmatpush1.msra.mxu0 0.0
      %1459 = vmatprep.subr.mxu0 0.0
      %1460 = vmatpush1.msra.mxu0 0.0
      %1461 = vmatprep.subr.mxu0 0.0
      %1462 = vmatpush1.msra.mxu0 0.0
      %1463 = vmatprep.subr.mxu0 0.0
      %1464 = vmatpush1.msra.mxu0 0.0
      %1465 = vmatprep.subr.mxu0 0.0
      %1466 = vmatpush1.msra.mxu0 0.0
      %1467 = vmatprep.subr.mxu0 0.0
      %1468 = vmatpush1.msra.mxu0 0.0
      %1469 = vmatprep.subr.mxu0 0.0
      %1470 = vmatpush1.msra.mxu0 0.0
      %1471 = vmatprep.mubr.f32.mxu0 0.0
      %1472 = vmatmul.mubr.f32.gmra.mrb[0].mxu0 %v1402
      %v1473 = vpop.f32.mrb[0].mxu0
      %v1474 = vadd.f32 %v1394, %v1473
      %v1475 = vpop.f32.mrb[0].mxu0
      %1476 = vmatprep.mubr.f32.mxu0 0.0
      %1477 = vmatmul.mubr.f32.gmra.mrb[0].mxu0 %v1405
      %v1478 = vpop.f32.mrb[0].mxu0
      %v1479 = vadd.f32 %v1399, %v1478
      %v1480 = vpop.f32.mrb[0].mxu0
      %1481 = vdwg.mxu0
      %v1482 = vld [vmem:[%s3 + $0xf0] sm:$0xff]
      %v1483 = vld [vmem:[%s3 + $0xf8] sm:$0x1]
      %v1484 = vld [vmem:[%s3 + $0x100] sm:$0xff]
      %v1485 = vld [vmem:[%s3 + $0x108] sm:$0xff]
      %v1486 = vld [vmem:[%s3 + $0x110] sm:$0xff]
      %v1487 = vld [vmem:[%s3 + $0x118] sm:$0xff]
      %v1490 = vsel %vm773, %v1187, -inf
      %v1491 = vrot.slane %v1490, 4
      %v1492 = vmax.f32 %v1490, %v1491
      %v1493 = vrot.slane %v1492, 2
      %v1494 = vmax.f32 %v1492, %v1493
      %v1495 = vrot.slane %v1494, 1
      %v1496 = vmax.f32 %v1494, %v1495
      %v1497 = vsel %vm773, %v1197, -inf
      %v1498 = vrot.slane %v1497, 4
      %v1499 = vmax.f32 %v1497, %v1498
      %v1500 = vrot.slane %v1499, 2
      %v1501 = vmax.f32 %v1499, %v1500
      %v1502 = vrot.slane %v1501, 1
      %v1503 = vmax.f32 %v1501, %v1502
      %v1504 = vsel %vm773, %v1188, -inf
      %v1505 = vrot.slane %v1504, 4
      %v1506 = vmax.f32 %v1504, %v1505
      %v1507 = vrot.slane %v1506, 2
      %v1508 = vmax.f32 %v1506, %v1507
      %v1509 = vrot.slane %v1508, 1
      %v1510 = vmax.f32 %v1508, %v1509
      %v1511 = vsel %vm773, %v1214, -inf
      %v1512 = vrot.slane %v1511, 4
      %v1513 = vmax.f32 %v1511, %v1512
      %v1514 = vrot.slane %v1513, 2
      %v1515 = vmax.f32 %v1513, %v1514
      %v1516 = vrot.slane %v1515, 1
      %v1517 = vmax.f32 %v1515, %v1516
      %v1518 = vlaneseq
      %v1519 = vshrl.u32 %v1518, 7
      %v1520 = vsub.s32 0, %v1519
      %v1521 = vrot.slane %v1483, %v1520
      %v1526 = vsel %vm583, %v1503, %v1496
      %v1527 = vsel %vm585, %v1510, %v1526
      %v1528 = vsel %vm587, %v1517, %v1527
      %v1529 = vsel %vm265, %v1528, 0
      %1531 = vmatprep.subr.mxu0 0.0
      %1532 = vmatpush1.msra.mxu0 %v1482
      %1533 = vmatprep.subr.mxu0 0.0
      %1534 = vmatpush1.msra.mxu0 0.0
      %1535 = vmatprep.subr.mxu0 0.0
      %1536 = vmatpush1.msra.mxu0 0.0
      %1537 = vmatprep.subr.mxu0 0.0
      %1538 = vmatpush1.msra.mxu0 0.0
      %1539 = vmatprep.subr.mxu0 0.0
      %1540 = vmatpush1.msra.mxu0 0.0
      %1541 = vmatprep.subr.mxu0 0.0
      %1542 = vmatpush1.msra.mxu0 0.0
      %1543 = vmatprep.subr.mxu0 0.0
      %1544 = vmatpush1.msra.mxu0 0.0
      %1545 = vmatprep.subr.mxu0 0.0
      %1546 = vmatpush1.msra.mxu0 0.0
      %1547 = vmatprep.subr.mxu0 0.0
      %1548 = vmatpush1.msra.mxu0 0.0
      %1549 = vmatprep.subr.mxu0 0.0
      %1550 = vmatpush1.msra.mxu0 0.0
      %1551 = vmatprep.subr.mxu0 0.0
      %1552 = vmatpush1.msra.mxu0 0.0
      %1553 = vmatprep.subr.mxu0 0.0
      %1554 = vmatpush1.msra.mxu0 0.0
      %1555 = vmatprep.subr.mxu0 0.0
      %1556 = vmatpush1.msra.mxu0 0.0
      %1557 = vmatprep.subr.mxu0 0.0
      %1558 = vmatpush1.msra.mxu0 0.0
      %1559 = vmatprep.subr.mxu0 0.0
      %1560 = vmatpush1.msra.mxu0 0.0
      %1561 = vmatprep.subr.mxu0 0.0
      %1562 = vmatpush1.msra.mxu0 0.0
      %1563 = vmatprep.subr.mxu0 0.0
      %1564 = vmatpush1.msra.mxu0 0.0
      %1565 = vmatprep.subr.mxu0 0.0
      %1566 = vmatpush1.msra.mxu0 0.0
      %1567 = vmatprep.subr.mxu0 0.0
      %1568 = vmatpush1.msra.mxu0 0.0
      %1569 = vmatprep.subr.mxu0 0.0
      %1570 = vmatpush1.msra.mxu0 0.0
      %1571 = vmatprep.subr.mxu0 0.0
      %1572 = vmatpush1.msra.mxu0 0.0
      %1573 = vmatprep.subr.mxu0 0.0
      %1574 = vmatpush1.msra.mxu0 0.0
      %1575 = vmatprep.subr.mxu0 0.0
      %1576 = vmatpush1.msra.mxu0 0.0
      %1577 = vmatprep.subr.mxu0 0.0
      %1578 = vmatpush1.msra.mxu0 0.0
      %1579 = vmatprep.subr.mxu0 0.0
      %1580 = vmatpush1.msra.mxu0 0.0
      %1581 = vmatprep.subr.mxu0 0.0
      %1582 = vmatpush1.msra.mxu0 0.0
      %1583 = vmatprep.subr.mxu0 0.0
      %1584 = vmatpush1.msra.mxu0 0.0
      %1585 = vmatprep.subr.mxu0 0.0
      %1586 = vmatpush1.msra.mxu0 0.0
      %1587 = vmatprep.subr.mxu0 0.0
      %1588 = vmatpush1.msra.mxu0 0.0
      %1589 = vmatprep.subr.mxu0 0.0
      %1590 = vmatpush1.msra.mxu0 0.0
      %1591 = vmatprep.subr.mxu0 0.0
      %1592 = vmatpush1.msra.mxu0 0.0
      %1593 = vmatprep.subr.mxu0 0.0
      %1594 = vmatpush1.msra.mxu0 0.0
      %1595 = vmatprep.mubr.f32.mxu0 0.0
      %1596 = vmatmul.mubr.f32.gmra.mrb[0].mxu0 %v1529
      %v1597 = vpop.f32.mrb[0].mxu0
      %v1598 = vadd.f32 %v1521, %v1597
      %v1599 = vpop.f32.mrb[0].mxu0
      %1600 = vdwg.mxu0
      %v1602 = vadd.f32 %v1598, %v1528
      %vm1603 = vcmp.ge.f32.partialorder %v1602, 0.0
      %v1604 = vmul.f32 %v1602, 0.2
      %v1605 = vsel %vm1603, %v1602, %v1604
      %1607 = vset.pattern.permute.xlu0 0
      %1608 = vperm.xlu0 %1607, %v1486
      %v1609 = vpop.permute.xlu0 %1608
      %1612 = vset.pattern.permute.xlu0 0
      %1613 = vperm.xlu0 %1612, %v1487
      %v1614 = vpop.permute.xlu0 %1613
      %v1617 = vsel %vm900, %v1484, 0
      %v1620 = vsel %vm900, %v1485, 0
      %v1623 = vsel %vm272, %v1605, 0
      %1625 = vmatprep.subr.mxu0 0.0
      %1626 = vmatpush1.msra.mxu0 %v1623
      %1627 = vmatprep.subr.mxu0 0.0
      %1628 = vmatpush1.msra.mxu0 0.0
      %1629 = vmatprep.subr.mxu0 0.0
      %1630 = vmatpush1.msra.mxu0 0.0
      %1631 = vmatprep.subr.mxu0 0.0
      %1632 = vmatpush1.msra.mxu0 0.0
      %1633 = vmatprep.subr.mxu0 0.0
      %1634 = vmatpush1.msra.mxu0 0.0
      %1635 = vmatprep.subr.mxu0 0.0
      %1636 = vmatpush1.msra.mxu0 0.0
      %1637 = vmatprep.subr.mxu0 0.0
      %1638 = vmatpush1.msra.mxu0 0.0
      %1639 = vmatprep.subr.mxu0 0.0
      %1640 = vmatpush1.msra.mxu0 0.0
      %1641 = vmatprep.subr.mxu0 0.0
      %1642 = vmatpush1.msra.mxu0 0.0
      %1643 = vmatprep.subr.mxu0 0.0
      %1644 = vmatpush1.msra.mxu0 0.0
      %1645 = vmatprep.subr.mxu0 0.0
      %1646 = vmatpush1.msra.mxu0 0.0
      %1647 = vmatprep.subr.mxu0 0.0
      %1648 = vmatpush1.msra.mxu0 0.0
      %1649 = vmatprep.subr.mxu0 0.0
      %1650 = vmatpush1.msra.mxu0 0.0
      %1651 = vmatprep.subr.mxu0 0.0
      %1652 = vmatpush1.msra.mxu0 0.0
      %1653 = vmatprep.subr.mxu0 0.0
      %1654 = vmatpush1.msra.mxu0 0.0
      %1655 = vmatprep.subr.mxu0 0.0
      %1656 = vmatpush1.msra.mxu0 0.0
      %1657 = vmatprep.subr.mxu0 0.0
      %1658 = vmatpush1.msra.mxu0 0.0
      %1659 = vmatprep.subr.mxu0 0.0
      %1660 = vmatpush1.msra.mxu0 0.0
      %1661 = vmatprep.subr.mxu0 0.0
      %1662 = vmatpush1.msra.mxu0 0.0
      %1663 = vmatprep.subr.mxu0 0.0
      %1664 = vmatpush1.msra.mxu0 0.0
      %1665 = vmatprep.subr.mxu0 0.0
      %1666 = vmatpush1.msra.mxu0 0.0
      %1667 = vmatprep.subr.mxu0 0.0
      %1668 = vmatpush1.msra.mxu0 0.0
      %1669 = vmatprep.subr.mxu0 0.0
      %1670 = vmatpush1.msra.mxu0 0.0
      %1671 = vmatprep.subr.mxu0 0.0
      %1672 = vmatpush1.msra.mxu0 0.0
      %1673 = vmatprep.subr.mxu0 0.0
      %1674 = vmatpush1.msra.mxu0 0.0
      %1675 = vmatprep.subr.mxu0 0.0
      %1676 = vmatpush1.msra.mxu0 0.0
      %1677 = vmatprep.subr.mxu0 0.0
      %1678 = vmatpush1.msra.mxu0 0.0
      %1679 = vmatprep.subr.mxu0 0.0
      %1680 = vmatpush1.msra.mxu0 0.0
      %1681 = vmatprep.subr.mxu0 0.0
      %1682 = vmatpush1.msra.mxu0 0.0
      %1683 = vmatprep.subr.mxu0 0.0
      %1684 = vmatpush1.msra.mxu0 0.0
      %1685 = vmatprep.subr.mxu0 0.0
      %1686 = vmatpush1.msra.mxu0 0.0
      %1687 = vmatprep.subr.mxu0 0.0
      %1688 = vmatpush1.msra.mxu0 0.0
      %1689 = vmatprep.mubr.f32.mxu0 0.0
      %1690 = vmatmul.mubr.f32.gmra.mrb[0].mxu0 %v1617
      %v1691 = vpop.f32.mrb[0].mxu0
      %v1692 = vadd.f32 %v1609, %v1691
      %v1693 = vpop.f32.mrb[0].mxu0
      %1694 = vmatprep.mubr.f32.mxu0 0.0
      %1695 = vmatmul.mubr.f32.gmra.mrb[0].mxu0 %v1620
      %v1696 = vpop.f32.mrb[0].mxu0
      %v1697 = vadd.f32 %v1614, %v1696
      %v1698 = vpop.f32.mrb[0].mxu0
      %1699 = vdwg.mxu0
      %v1700 = vadd.f32 %v1474, %v1692
      %v1701 = vadd.f32 %v1479, %v1697
      %v1702 = vld [vmem:[%s3 + $0x120] sm:$0xff]
      %v1703 = vld [vmem:[%s3 + $0x128] sm:$0x1]
      %v1704 = vld [vmem:[%s3 + $0x130] sm:$0xff]
      %v1705 = vld [vmem:[%s3 + $0x138] sm:$0xff]
      %v1706 = vld [vmem:[%s3 + $0x140] sm:$0xff]
      %v1707 = vld [vmem:[%s3 + $0x148] sm:$0xff]
      %v1708 = vsel %vm265, %v1187, -inf
      %v1709 = vrot.slane %v1708, 4
      %v1710 = vmax.f32 %v1708, %v1709
      %v1711 = vrot.slane %v1710, 2
      %v1712 = vmax.f32 %v1710, %v1711
      %v1713 = vrot.slane %v1712, 1
      %v1714 = vmax.f32 %v1712, %v1713
      %v1715 = vsel %vm265, %v1188, -inf
      %v1716 = vrot.slane %v1715, 4
      %v1717 = vmax.f32 %v1715, %v1716
      %v1718 = vrot.slane %v1717, 2
      %v1719 = vmax.f32 %v1717, %v1718
      %v1720 = vrot.slane %v1719, 1
      %v1721 = vmax.f32 %v1719, %v1720
      %v1722 = vlaneseq
      %v1723 = vshrl.u32 %v1722, 7
      %v1724 = vsub.s32 0, %v1723
      %v1725 = vrot.slane %v1703, %v1724
      %v1728 = vsel %vm583, %v1721, %v1714
      %v1729 = vsel %vm265, %v1728, 0
      %1731 = vmatprep.subr.mxu0 0.0
      %1732 = vmatpush1.msra.mxu0 %v1702
      %1733 = vmatprep.subr.mxu0 0.0
      %1734 = vmatpush1.msra.mxu0 0.0
      %1735 = vmatprep.subr.mxu0 0.0
      %1736 = vmatpush1.msra.mxu0 0.0
      %1737 = vmatprep.subr.mxu0 0.0
      %1738 = vmatpush1.msra.mxu0 0.0
      %1739 = vmatprep.subr.mxu0 0.0
      %1740 = vmatpush1.msra.mxu0 0.0
      %1741 = vmatprep.subr.mxu0 0.0
      %1742 = vmatpush1.msra.mxu0 0.0
      %1743 = vmatprep.subr.mxu0 0.0
      %1744 = vmatpush1.msra.mxu0 0.0
      %1745 = vmatprep.subr.mxu0 0.0
      %1746 = vmatpush1.msra.mxu0 0.0
      %1747 = vmatprep.subr.mxu0 0.0
      %1748 = vmatpush1.msra.mxu0 0.0
      %1749 = vmatprep.subr.mxu0 0.0
      %1750 = vmatpush1.msra.mxu0 0.0
      %1751 = vmatprep.subr.mxu0 0.0
      %1752 = vmatpush1.msra.mxu0 0.0
      %1753 = vmatprep.subr.mxu0 0.0
      %1754 = vmatpush1.msra.mxu0 0.0
      %1755 = vmatprep.subr.mxu0 0.0
      %1756 = vmatpush1.msra.mxu0 0.0
      %1757 = vmatprep.subr.mxu0 0.0
      %1758 = vmatpush1.msra.mxu0 0.0
      %1759 = vmatprep.subr.mxu0 0.0
      %1760 = vmatpush1.msra.mxu0 0.0
      %1761 = vmatprep.subr.mxu0 0.0
      %1762 = vmatpush1.msra.mxu0 0.0
      %1763 = vmatprep.subr.mxu0 0.0
      %1764 = vmatpush1.msra.mxu0 0.0
      %1765 = vmatprep.subr.mxu0 0.0
      %1766 = vmatpush1.msra.mxu0 0.0
      %1767 = vmatprep.subr.mxu0 0.0
      %1768 = vmatpush1.msra.mxu0 0.0
      %1769 = vmatprep.subr.mxu0 0.0
      %1770 = vmatpush1.msra.mxu0 0.0
      %1771 = vmatprep.subr.mxu0 0.0
      %1772 = vmatpush1.msra.mxu0 0.0
      %1773 = vmatprep.subr.mxu0 0.0
      %1774 = vmatpush1.msra.mxu0 0.0
      %1775 = vmatprep.subr.mxu0 0.0
      %1776 = vmatpush1.msra.mxu0 0.0
      %1777 = vmatprep.subr.mxu0 0.0
      %1778 = vmatpush1.msra.mxu0 0.0
      %1779 = vmatprep.subr.mxu0 0.0
      %1780 = vmatpush1.msra.mxu0 0.0
      %1781 = vmatprep.subr.mxu0 0.0
      %1782 = vmatpush1.msra.mxu0 0.0
      %1783 = vmatprep.subr.mxu0 0.0
      %1784 = vmatpush1.msra.mxu0 0.0
      %1785 = vmatprep.subr.mxu0 0.0
      %1786 = vmatpush1.msra.mxu0 0.0
      %1787 = vmatprep.subr.mxu0 0.0
      %1788 = vmatpush1.msra.mxu0 0.0
      %1789 = vmatprep.subr.mxu0 0.0
      %1790 = vmatpush1.msra.mxu0 0.0
      %1791 = vmatprep.subr.mxu0 0.0
      %1792 = vmatpush1.msra.mxu0 0.0
      %1793 = vmatprep.subr.mxu0 0.0
      %1794 = vmatpush1.msra.mxu0 0.0
      %1795 = vmatprep.mubr.f32.mxu0 0.0
      %1796 = vmatmul.mubr.f32.gmra.mrb[0].mxu0 %v1729
      %v1797 = vpop.f32.mrb[0].mxu0
      %v1798 = vadd.f32 %v1725, %v1797
      %v1799 = vpop.f32.mrb[0].mxu0
      %1800 = vdwg.mxu0
      %v1802 = vadd.f32 %v1798, %v1728
      %vm1803 = vcmp.ge.f32.partialorder %v1802, 0.0
      %v1804 = vmul.f32 %v1802, 0.2
      %v1805 = vsel %vm1803, %v1802, %v1804
      %1807 = vset.pattern.permute.xlu0 0
      %1808 = vperm.xlu0 %1807, %v1706
      %v1809 = vpop.permute.xlu0 %1808
      %1812 = vset.pattern.permute.xlu0 0
      %1813 = vperm.xlu0 %1812, %v1707
      %v1814 = vpop.permute.xlu0 %1813
      %v1817 = vsel %vm1101, %v1704, 0
      %v1820 = vsel %vm1101, %v1705, 0
      %v1823 = vsel %vm1108, %v1805, 0
      %1825 = vmatprep.subr.mxu0 0.0
      %1826 = vmatpush1.msra.mxu0 %v1823
      %1827 = vmatprep.subr.mxu0 0.0
      %1828 = vmatpush1.msra.mxu0 0.0
      %1829 = vmatprep.subr.mxu0 0.0
      %1830 = vmatpush1.msra.mxu0 0.0
      %1831 = vmatprep.subr.mxu0 0.0
      %1832 = vmatpush1.msra.mxu0 0.0
      %1833 = vmatprep.subr.mxu0 0.0
      %1834 = vmatpush1.msra.mxu0 0.0
      %1835 = vmatprep.subr.mxu0 0.0
      %1836 = vmatpush1.msra.mxu0 0.0
      %1837 = vmatprep.subr.mxu0 0.0
      %1838 = vmatpush1.msra.mxu0 0.0
      %1839 = vmatprep.subr.mxu0 0.0
      %1840 = vmatpush1.msra.mxu0 0.0
      %1841 = vmatprep.subr.mxu0 0.0
      %1842 = vmatpush1.msra.mxu0 0.0
      %1843 = vmatprep.subr.mxu0 0.0
      %1844 = vmatpush1.msra.mxu0 0.0
      %1845 = vmatprep.subr.mxu0 0.0
      %1846 = vmatpush1.msra.mxu0 0.0
      %1847 = vmatprep.subr.mxu0 0.0
      %1848 = vmatpush1.msra.mxu0 0.0
      %1849 = vmatprep.subr.mxu0 0.0
      %1850 = vmatpush1.msra.mxu0 0.0
      %1851 = vmatprep.subr.mxu0 0.0
      %1852 = vmatpush1.msra.mxu0 0.0
      %1853 = vmatprep.subr.mxu0 0.0
      %1854 = vmatpush1.msra.mxu0 0.0
      %1855 = vmatprep.subr.mxu0 0.0
      %1856 = vmatpush1.msra.mxu0 0.0
      %1857 = vmatprep.subr.mxu0 0.0
      %1858 = vmatpush1.msra.mxu0 0.0
      %1859 = vmatprep.subr.mxu0 0.0
      %1860 = vmatpush1.msra.mxu0 0.0
      %1861 = vmatprep.subr.mxu0 0.0
      %1862 = vmatpush1.msra.mxu0 0.0
      %1863 = vmatprep.subr.mxu0 0.0
      %1864 = vmatpush1.msra.mxu0 0.0
      %1865 = vmatprep.subr.mxu0 0.0
      %1866 = vmatpush1.msra.mxu0 0.0
      %1867 = vmatprep.subr.mxu0 0.0
      %1868 = vmatpush1.msra.mxu0 0.0
      %1869 = vmatprep.subr.mxu0 0.0
      %1870 = vmatpush1.msra.mxu0 0.0
      %1871 = vmatprep.subr.mxu0 0.0
      %1872 = vmatpush1.msra.mxu0 0.0
      %1873 = vmatprep.subr.mxu0 0.0
      %1874 = vmatpush1.msra.mxu0 0.0
      %1875 = vmatprep.subr.mxu0 0.0
      %1876 = vmatpush1.msra.mxu0 0.0
      %1877 = vmatprep.subr.mxu0 0.0
      %1878 = vmatpush1.msra.mxu0 0.0
      %1879 = vmatprep.subr.mxu0 0.0
      %1880 = vmatpush1.msra.mxu0 0.0
      %1881 = vmatprep.subr.mxu0 0.0
      %1882 = vmatpush1.msra.mxu0 0.0
      %1883 = vmatprep.subr.mxu0 0.0
      %1884 = vmatpush1.msra.mxu0 0.0
      %1885 = vmatprep.subr.mxu0 0.0
      %1886 = vmatpush1.msra.mxu0 0.0
      %1887 = vmatprep.subr.mxu0 0.0
      %1888 = vmatpush1.msra.mxu0 0.0
      %1889 = vmatprep.mubr.f32.mxu0 0.0
      %1890 = vmatmul.mubr.f32.gmra.mrb[0].mxu0 %v1817
      %v1891 = vpop.f32.mrb[0].mxu0
      %v1892 = vadd.f32 %v1809, %v1891
      %v1893 = vpop.f32.mrb[0].mxu0
      %1894 = vmatprep.mubr.f32.mxu0 0.0
      %1895 = vmatmul.mubr.f32.gmra.mrb[0].mxu0 %v1820
      %v1896 = vpop.f32.mrb[0].mxu0
      %v1897 = vadd.f32 %v1814, %v1896
      %v1898 = vpop.f32.mrb[0].mxu0
      %1899 = vdwg.mxu0
      %v1900 = vadd.f32 %v1700, %v1892
      %v1901 = vadd.f32 %v1701, %v1897
      %1902 = vxpose.xlu0.b32.start [1/16] %v1900, 128
      %1903 = vxpose.xlu0.b32.cont [2/16] %v1901, 128
      %1904 = vxpose.xlu0.b32.cont [3/16] 0.0, 128
      %1905 = vxpose.xlu0.b32.cont [4/16] 0.0, 128
      %1906 = vxpose.xlu0.b32.cont [5/16] 0.0, 128
      %1907 = vxpose.xlu0.b32.cont [6/16] 0.0, 128
      %1908 = vxpose.xlu0.b32.cont [7/16] 0.0, 128
      %1909 = vxpose.xlu0.b32.cont [8/16] 0.0, 128
      %1910 = vxpose.xlu0.b32.cont [9/16] 0.0, 128
      %1911 = vxpose.xlu0.b32.cont [10/16] 0.0, 128
      %1912 = vxpose.xlu0.b32.cont [11/16] 0.0, 128
      %1913 = vxpose.xlu0.b32.cont [12/16] 0.0, 128
      %1914 = vxpose.xlu0.b32.cont [13/16] 0.0, 128
      %1915 = vxpose.xlu0.b32.cont [14/16] 0.0, 128
      %1916 = vxpose.xlu0.b32.cont [15/16] 0.0, 128
      %1917 = vxpose.xlu0.b32.end [16/16] 0.0, 128
      %v1918 = vpop.trf.xlu0
      %v1919 = vpop.trf.xlu0
      %v1920 = vpop.trf.xlu0
      %v1921 = vpop.trf.xlu0
      %v1922 = vpop.trf.xlu0
      %v1923 = vpop.trf.xlu0
      %v1924 = vpop.trf.xlu0
      %v1925 = vpop.trf.xlu0
      %v1926 = vpop.trf.xlu0
      %v1927 = vpop.trf.xlu0
      %v1928 = vpop.trf.xlu0
      %v1929 = vpop.trf.xlu0
      %v1930 = vpop.trf.xlu0
      %v1931 = vpop.trf.xlu0
      %v1932 = vpop.trf.xlu0
      %v1933 = vpop.trf.xlu0
      %vm1934 = vcmask 130048
      %v1936 = vsel %vm1934, %v1918, 0
      %1938 = vmatprep.subr.mxu0 %v326
      %1939 = vmatpush1.msra.mxu0 %v324
      %1940 = vmatprep.subr.mxu0 %v330
      %1941 = vmatpush1.msra.mxu0 %v328
      %1942 = vmatprep.subr.mxu0 0.0
      %1943 = vmatpush1.msra.mxu0 0.0
      %1944 = vmatprep.subr.mxu0 0.0
      %1945 = vmatpush1.msra.mxu0 0.0
      %1946 = vmatprep.subr.mxu0 0.0
      %1947 = vmatpush1.msra.mxu0 0.0
      %1948 = vmatprep.subr.mxu0 0.0
      %1949 = vmatpush1.msra.mxu0 0.0
      %1950 = vmatprep.subr.mxu0 0.0
      %1951 = vmatpush1.msra.mxu0 0.0
      %1952 = vmatprep.subr.mxu0 0.0
      %1953 = vmatpush1.msra.mxu0 0.0
      %1954 = vmatprep.subr.mxu0 0.0
      %1955 = vmatpush1.msra.mxu0 0.0
      %1956 = vmatprep.subr.mxu0 0.0
      %1957 = vmatpush1.msra.mxu0 0.0
      %1958 = vmatprep.subr.mxu0 0.0
      %1959 = vmatpush1.msra.mxu0 0.0
      %1960 = vmatprep.subr.mxu0 0.0
      %1961 = vmatpush1.msra.mxu0 0.0
      %1962 = vmatprep.subr.mxu0 0.0
      %1963 = vmatpush1.msra.mxu0 0.0
      %1964 = vmatprep.subr.mxu0 0.0
      %1965 = vmatpush1.msra.mxu0 0.0
      %1966 = vmatprep.subr.mxu0 0.0
      %1967 = vmatpush1.msra.mxu0 0.0
      %1968 = vmatprep.subr.mxu0 0.0
      %1969 = vmatpush1.msra.mxu0 0.0
      %1970 = vmatprep.subr.mxu0 0.0
      %1971 = vmatpush1.msra.mxu0 0.0
      %1972 = vmatprep.subr.mxu0 0.0
      %1973 = vmatpush1.msra.mxu0 0.0
      %1974 = vmatprep.subr.mxu0 0.0
      %1975 = vmatpush1.msra.mxu0 0.0
      %1976 = vmatprep.subr.mxu0 0.0
      %1977 = vmatpush1.msra.mxu0 0.0
      %1978 = vmatprep.subr.mxu0 0.0
      %1979 = vmatpush1.msra.mxu0 0.0
      %1980 = vmatprep.subr.mxu0 0.0
      %1981 = vmatpush1.msra.mxu0 0.0
      %1982 = vmatprep.subr.mxu0 0.0
      %1983 = vmatpush1.msra.mxu0 0.0
      %1984 = vmatprep.subr.mxu0 0.0
      %1985 = vmatpush1.msra.mxu0 0.0
      %1986 = vmatprep.subr.mxu0 0.0
      %1987 = vmatpush1.msra.mxu0 0.0
      %1988 = vmatprep.subr.mxu0 0.0
      %1989 = vmatpush1.msra.mxu0 0.0
      %1990 = vmatprep.subr.mxu0 0.0
      %1991 = vmatpush1.msra.mxu0 0.0
      %1992 = vmatprep.subr.mxu0 0.0
      %1993 = vmatpush1.msra.mxu0 0.0
      %1994 = vmatprep.subr.mxu0 0.0
      %1995 = vmatpush1.msra.mxu0 0.0
      %1996 = vmatprep.subr.mxu0 0.0
      %1997 = vmatpush1.msra.mxu0 0.0
      %1998 = vmatprep.subr.mxu0 0.0
      %1999 = vmatpush1.msra.mxu0 0.0
      %2000 = vmatprep.subr.mxu0 0.0
      %2001 = vmatpush1.msra.mxu0 0.0
      %2002 = vmatprep.mubr.f32.mxu0 0.0
      %2003 = vmatmul.mubr.f32.gmra.mrb[0].mxu0 %v1936
      %v2004 = vpop.f32.mrb[0].mxu0
      %v2005 = vadd.f32 0.0, %v2004
      %v2006 = vpop.f32.mrb[0].mxu0
      %v2007 = vadd.f32 0.0, %v2006
      %2008 = vdwg.mxu0
      %v2009 = vld [vmem:[%s2 + $0x14] sm:$0xf]
      %v2010 = vpack.c.bf16 %v2005, %v2005
      %v2011 = vpack.c.bf16 %v2007, %v2007
      %v2012 = vld [vmem:[%s3 + $0x28] sm:$0xff]
      %2014 = vset.pattern.permute.xlu0 0
      %2015 = vperm.xlu0 %2014, %v2012
      %v2016 = vpop.permute.xlu0 %2015
      %v2019 = vsel %vm265, %v2009, 0
      %v2022 = vsel %vm272, %v2010, 0
      %v2025 = vsel %vm272, %v2011, 0
      %2027 = vmatprep.subr.bf16.mxu0 %v2025
      %2028 = vmatpush1.bf16.msra.mxu0 %v2022
      %2029 = vmatprep.subr.bf16.mxu0 0
      %2030 = vmatpush1.bf16.msra.mxu0 0
      %2031 = vmatprep.subr.bf16.mxu0 0
      %2032 = vmatpush1.bf16.msra.mxu0 0
      %2033 = vmatprep.subr.bf16.mxu0 0
      %2034 = vmatpush1.bf16.msra.mxu0 0
      %2035 = vmatprep.subr.bf16.mxu0 0
      %2036 = vmatpush1.bf16.msra.mxu0 0
      %2037 = vmatprep.subr.bf16.mxu0 0
      %2038 = vmatpush1.bf16.msra.mxu0 0
      %2039 = vmatprep.subr.bf16.mxu0 0
      %2040 = vmatpush1.bf16.msra.mxu0 0
      %2041 = vmatprep.subr.bf16.mxu0 0
      %2042 = vmatpush1.bf16.msra.mxu0 0
      %2043 = vmatprep.subr.bf16.mxu0 0
      %2044 = vmatpush1.bf16.msra.mxu0 0
      %2045 = vmatprep.subr.bf16.mxu0 0
      %2046 = vmatpush1.bf16.msra.mxu0 0
      %2047 = vmatprep.subr.bf16.mxu0 0
      %2048 = vmatpush1.bf16.msra.mxu0 0
      %2049 = vmatprep.subr.bf16.mxu0 0
      %2050 = vmatpush1.bf16.msra.mxu0 0
      %2051 = vmatprep.subr.bf16.mxu0 0
      %2052 = vmatpush1.bf16.msra.mxu0 0
      %2053 = vmatprep.subr.bf16.mxu0 0
      %2054 = vmatpush1.bf16.msra.mxu0 0
      %2055 = vmatprep.subr.bf16.mxu0 0
      %2056 = vmatpush1.bf16.msra.mxu0 0
      %2057 = vmatprep.subr.bf16.mxu0 0
      %2058 = vmatpush1.bf16.msra.mxu0 0
      %2059 = vmatprep.mubr.bf16.mxu0 0
      %2060 = vmatmul.mubr.bf16.gmra.mrb[0].mxu0 %v2019
      %v2061 = vpop.f32.mrb[0].mxu0
      %v2062 = vadd.f32 %v2016, %v2061
      %v2063 = vpop.f32.mrb[0].mxu0
      %v2064 = vadd.f32 %v2016, %v2063
      %v2065 = vpop.f32.mrb[0].mxu0
      %v2066 = vpop.f32.mrb[0].mxu0
      %2067 = vdwg.mxu0
      %v2068 = vadd.f32 %v219, %v2062
      %v2069 = vadd.f32 %v220, %v2064
      %v2070 = vadd.f32 %v2068, %v221
      %v2071 = vadd.f32 %v2069, %v222
      %2072 = vst [vmem:[%s217] sm:$0xff] %v2070
      %2073 = vst [vmem:[%s217 + $0x8] sm:$0xff] %v2071
      %p2074 = scmp.lt.s32.totalorder %s15, 1
      %s2075 = scalar_select %p2074, %s15, 1
      %s2076 = smul.addr %s2075, 2
      %s2077 = smul.addr %s2076, 8
      %s2078 = scalar_lea.vmem %s4, %s2077
      // Predicated region
      $region37: #{gru_forward.1} parent=35 // pred_check
        %p2079 = pneg %p127
      $region38: #{gru_forward.1} parent=35 // pred_check_branch
        %2081 = sbr.rel (%p2079) target = $region40
      $region39: #{gru_forward.1} parent=35 // pred_region
        _
      $region40: #{gru_forward.1} parent=35 // pred_fallthru
        _
    $region36: #{gru_forward.1} parent=5 // pred_fallthru
      _
    %p2082 = scmp.le.s32.totalorder 2, %s10
    // Predicated region
    $region41: #{gru_forward.1} parent=5 // pred_check
      %p2083 = pneg %p2082
    $region42: #{gru_forward.1} parent=5 // pred_check_branch
      %2085 = sbr.rel (%p2083) target = $region44
    $region43: #{gru_forward.1} parent=5 // pred_region
      %s2086 = ssub.s32 %s10, 2
      // Predicated region
      $region45: #{gru_forward.1} parent=43 // pred_check
        %p2087 = pneg %p133
      $region46: #{gru_forward.1} parent=43 // pred_check_branch
        %2089 = sbr.rel (%p2087) target = $region48
      $region47: #{gru_forward.1} parent=43 // pred_region
        %p2090 = scmp.lt.s32.totalorder %s16, 1
        %s2091 = scalar_select %p2090, %s16, 1
        %s2092 = smul.addr %s2091, 2
        %s2093 = smul.addr %s2092, 8
        %s2094 = scalar_lea.vmem %s4, %s2093
      $region48: #{gru_forward.1} parent=43 // pred_fallthru
        _
    $region44: #{gru_forward.1} parent=5 // pred_fallthru
      _
  $region6: #{gru_forward.1} parent=0 // loop_footer
    %s14 = sadd.s32 1, %s10
  $region7: #{gru_forward.1} parent=0 // loop_footer_branch
    %9 = sbr.rel target = $region3
  $region8: #{gru_forward.1} parent=0 // loop_exit
    _

</llo_original>
